<compile_context>
chip_gen: v7x
topology: tpu7x:2x2x1
jax: 0.10.0
libtpu: 0.0.40
codegen_flags: <defaults>
</compile_context>

<pallas_src>
import functools
import math

import jax
import jax.numpy as jnp
import numpy as np
from jax.experimental import pallas as pl
from jax.experimental.pallas import tpu as pltpu


def _round_up(x, m):
    return ((x + m - 1) // m) * m


# ----------------------------------------------------------------------------
# Fused Pallas kernel: projections + multi-head attention + output projection
# ----------------------------------------------------------------------------
def _emformer_fused_kernel(klen_ref,
                           qin_ref, kvin_ref, bias_ref,
                           wq_ref, bq_ref, wk_ref, bk_ref, wv_ref, bv_ref,
                           wout_ref, bout_ref,
                           o_ref,
                           k_scr, v_scr, attn_scr,
                           *, num_heads, negative_inf):
    tq, D = qin_ref.shape
    tk = kvin_ref.shape[0]
    H = num_heads
    dh = D // H
    dt = o_ref.dtype

    b = pl.program_id(0)
    qi = pl.program_id(1)

    # K/V projections once per batch element; the query-block grid axis is
    # "arbitrary" (sequential), so qi == 0 marks the start of each batch sweep.
    @pl.when(qi == 0)
    def _():
        x_kv = kvin_ref[...]                                   # (tk, D)
        k_scr[...] = (jnp.dot(x_kv, wk_ref[...],
                              preferred_element_type=jnp.float32)
                      + bk_ref[...]).astype(dt)
        v_scr[...] = (jnp.dot(x_kv, wv_ref[...],
                              preferred_element_type=jnp.float32)
                      + bv_ref[...]).astype(dt)

    # Query projection (1/sqrt(d_head) already folded into wq/bq by wrapper).
    q = (jnp.dot(qin_ref[...], wq_ref[...],
                 preferred_element_type=jnp.float32)
         + bq_ref[...]).astype(dt)                             # (tq, D)

    bias = bias_ref[...]                                       # (tq, tk) f32
    klen = klen_ref[b]                                         # SMEM scalar
    kpos = jax.lax.broadcasted_iota(jnp.int32, (1, tk), 1)
    pad_mask = kpos >= klen                                    # (1, tk) bool

    # Per-head attention; each head's output goes into its lane slice of the
    # VMEM scratch slab, so the output projection below is one dense matmul.
    for h in range(H):                                         # static unroll
        lo = h * dh
        qh = q[:, lo:lo + dh]                                  # (tq, dh)
        kh = k_scr[:, lo:lo + dh]                              # (tk, dh)
        vh = v_scr[:, lo:lo + dh]                              # (tk, dh)

        s = jnp.einsum('qd,kd->qk', qh, kh,
                       preferred_element_type=jnp.float32)     # (tq, tk)
        s = jnp.where(pad_mask, negative_inf, s + bias)
        m = jnp.max(s, axis=-1, keepdims=True)
        p = jnp.exp(s - m)
        probs = p * pl.reciprocal(jnp.sum(p, axis=-1, keepdims=True),
                                  approx=True)
        # TODO(synk): attention-probability dropout omitted (module default p=0.0).
        ah = jnp.dot(probs.astype(dt), vh,
                     preferred_element_type=jnp.float32)       # (tq, dh)
        attn_scr[:, lo:lo + dh] = ah.astype(dt)

    out = (jnp.dot(attn_scr[...], wout_ref[...],
                   preferred_element_type=jnp.float32)
           + bout_ref[...])                                    # (tq, D)
    o_ref[...] = out.astype(dt)


def emformer_attention_fused(klengths, q_in, kv_in, bias,
                             wq_t, bq, wk_t, bk, wv_t, bv, wout_t, bout,
                             num_heads, negative_inf, tq_blk):
    """q_in: (B, Tq_pad, D), kv_in: (B, Tk_pad, D), bias: (Tq_pad, Tk_pad)."""
    B, Tq_pad, D = q_in.shape
    Tk_pad = kv_in.shape[1]
    nq = Tq_pad // tq_blk
    dt = q_in.dtype
    dh = D // num_heads
    itemsize = jnp.dtype(dt).itemsize

    kern = functools.partial(_emformer_fused_kernel, num_heads=num_heads,
                             negative_inf=float(negative_inf))
    const2 = lambda b, qi, kl: (0, 0)

    # Advisory cost estimate so XLA overlaps the wrapper concats/transposes.
    flops = 2 * B * (Tq_pad * D * D          # Q projection
                     + 2 * Tk_pad * D * D    # K/V projections
                     + 2 * num_heads * Tq_pad * Tk_pad * dh   # scores + PV
                     + Tq_pad * D * D)       # output projection
    transcendentals = B * num_heads * Tq_pad * Tk_pad
    bytes_accessed = ((q_in.size + kv_in.size) * itemsize
                      + bias.size * 4
                      + (4 * D * D + 4 * D) * itemsize
                      + B * Tq_pad * D * itemsize
                      + klengths.size * 4)

    # Explicit VMEM budget derived from the actual block sizes (inputs/outputs
    # double-buffered by the pipeline, weights double-buffered too, + scratch).
    vmem_needed = (2 * tq_blk * D * itemsize            # q block
                   + 2 * Tk_pad * D * itemsize          # kv block
                   + 2 * tq_blk * Tk_pad * 4            # bias block (f32)
                   + 2 * (4 * D * D + 4 * D) * itemsize # weights + biases
                   + 2 * tq_blk * D * itemsize          # output block
                   + (2 * Tk_pad * D + tq_blk * D) * itemsize)  # scratch
    vmem_limit = int(min(max(2 * vmem_needed + (4 << 20), 16 << 20), 64 << 20))

    grid_spec = pltpu.PrefetchScalarGridSpec(
        num_scalar_prefetch=1,
        grid=(B, nq),
        in_specs=[
            pl.BlockSpec((None, tq_blk, D), lambda b, qi, kl: (b, qi, 0)),
            pl.BlockSpec((None, Tk_pad, D), lambda b, qi, kl: (b, 0, 0)),
            pl.BlockSpec((tq_blk, Tk_pad), lambda b, qi, kl: (qi, 0)),
            pl.BlockSpec((D, D), const2),   # wq_t (resident, constant index)
            pl.BlockSpec((1, D), const2),   # bq
            pl.BlockSpec((D, D), const2),   # wk_t
            pl.BlockSpec((1, D), const2),   # bk
            pl.BlockSpec((D, D), const2),   # wv_t
            pl.BlockSpec((1, D), const2),   # bv
            pl.BlockSpec((D, D), const2),   # wout_t
            pl.BlockSpec((1, D), const2),   # bout
        ],
        out_specs=pl.BlockSpec((None, tq_blk, D), lambda b, qi, kl: (b, qi, 0)),
        scratch_shapes=[
            pltpu.VMEM((Tk_pad, D), dt),    # projected K (persists across qi)
            pltpu.VMEM((Tk_pad, D), dt),    # projected V
            pltpu.VMEM((tq_blk, D), dt),    # per-block attention output slab
        ],
    )

    return pl.pallas_call(
        kern,
        out_shape=jax.ShapeDtypeStruct((B, Tq_pad, D), dt),
        grid_spec=grid_spec,
        compiler_params=pltpu.CompilerParams(
            dimension_semantics=("parallel", "arbitrary"),
            vmem_limit_bytes=vmem_limit),
        cost_estimate=pl.CostEstimate(
            flops=int(flops),
            transcendentals=int(transcendentals),
            bytes_accessed=int(bytes_accessed)),
    )(klengths, q_in, kv_in, bias, wq_t, bq, wk_t, bk, wv_t, bv, wout_t, bout)


# ----------------------------------------------------------------------------
# Module wrapper (parameter setup + glue in plain JAX)
# ----------------------------------------------------------------------------
class EmformerAttention:
    def __init__(self, input_dim, num_heads, key, tanh_on_mem=False,
                 negative_inf=-1e8):
        assert input_dim % num_heads == 0
        self.input_dim = input_dim
        self.num_heads = num_heads
        self.tanh_on_mem = tanh_on_mem
        self.negative_inf = float(negative_inf)
        self.scaling = (input_dim // num_heads) ** (-0.5)

        bound = 1.0 / math.sqrt(input_dim)   # PyTorch nn.Linear default init
        ks = jax.random.split(key, 6)
        u = lambda k, shape: jax.random.uniform(k, shape, jnp.float32, -bound, bound)
        self.w_kv = u(ks[0], (2 * input_dim, input_dim))
        self.b_kv = u(ks[1], (2 * input_dim,))
        self.w_q = u(ks[2], (input_dim, input_dim))
        self.b_q = u(ks[3], (input_dim,))
        self.w_out = u(ks[4], (input_dim, input_dim))
        self.b_out = u(ks[5], (input_dim,))

    def _forward_impl(self, utterance, lengths, right_context, summary, mems,
                      attention_mask):
        U, B, D = utterance.shape
        R, S, M = right_context.shape[0], summary.shape[0], mems.shape[0]
        Tq, Tk = R + U + S, M + R + U
        dt = utterance.dtype

        # (8, 128)-aligned padded extents; query-block size multiple of 8.
        tq_blk = min(128, _round_up(Tq, 8))
        Tq_pad = _round_up(Tq, tq_blk)
        Tk_pad = _round_up(Tk, 128)

        # Batch-major (B, L, D) Q/KV inputs (the only HBM materialization).
        q_in = jnp.transpose(
            jnp.concatenate([right_context, utterance, summary], axis=0), (1, 0, 2))
        kv_in = jnp.transpose(
            jnp.concatenate([mems, right_context, utterance], axis=0), (1, 0, 2))
        q_in = jnp.pad(q_in, ((0, 0), (0, Tq_pad - Tq), (0, 0)))
        kv_in = jnp.pad(kv_in, ((0, 0), (0, Tk_pad - Tk), (0, 0)))

        # Shared (batch-independent) additive attention-mask bias (f32).
        amask_bias = jnp.where(attention_mask,
                               jnp.float32(self.negative_inf), jnp.float32(0.0))
        bias = jnp.pad(amask_bias, ((0, Tq_pad - Tq), (0, Tk_pad - Tk)))

        # Per-batch valid key lengths (padding mask is rebuilt in-kernel).
        if B == 1:
            # torchaudio's _gen_padding_mask returns None for B == 1; only the
            # artificial Tk padding columns need masking here.
            klengths = jnp.full((1,), Tk, dtype=jnp.int32)
        else:
            rc_blocks_len = Tq - jnp.max(lengths) - S
            klengths = (lengths + M + rc_blocks_len).astype(jnp.int32)

        # Fold the 1/sqrt(d_head) scaling into the query projection.
        wq_t = (self.w_q * self.scaling).T.astype(dt)
        bq = (self.b_q * self.scaling).reshape(1, D).astype(dt)
        wk_t = self.w_kv[:D].T.astype(dt)
        bk = self.b_kv[:D].reshape(1, D).astype(dt)
        wv_t = self.w_kv[D:].T.astype(dt)
        bv = self.b_kv[D:].reshape(1, D).astype(dt)
        wout_t = self.w_out.T.astype(dt)
        bout = self.b_out.reshape(1, D).astype(dt)

        out_btd = emformer_attention_fused(
            klengths, q_in, kv_in, bias,
            wq_t, bq, wk_t, bk, wv_t, bv, wout_t, bout,
            self.num_heads, self.negative_inf, tq_blk)

        out = jnp.transpose(out_btd, (1, 0, 2))[:Tq]          # (Tq, B, D)

        output_right_context = out[:Tq - S]
        output_mems = out[Tq - S:]
        if self.tanh_on_mem:
            output_mems = jnp.tanh(output_mems)
        else:
            output_mems = jnp.clip(output_mems, -10.0, 10.0)
        return output_right_context, output_mems

    def forward(self, utterance, lengths, right_context, summary, mems,
                attention_mask):
        out, out_mems = self._forward_impl(
            utterance, lengths, right_context, summary, mems, attention_mask)
        return out, out_mems[:-1]


# ----------------------------------------------------------------------------
# Pure-JAX reference (mirrors the PyTorch code) for verification
# ----------------------------------------------------------------------------
def reference_forward(mod, utterance, lengths, right_context, summary, mems,
                      attention_mask):
    U, B, D = utterance.shape
    R, S, M = right_context.shape[0], summary.shape[0], mems.shape[0]
    H, dh = mod.num_heads, D // mod.num_heads
    Tq, Tk = R + U + S, M + R + U

    q_in = jnp.concatenate([right_context, utterance, summary], axis=0)
    kv_in = jnp.concatenate([mems, right_context, utterance], axis=0)
    query = q_in @ mod.w_q.T + mod.b_q
    kv = kv_in @ mod.w_kv.T + mod.b_kv
    key_, value = kv[..., :D], kv[..., D:]

    rq = query.reshape(Tq, B * H, dh).transpose(1, 0, 2)
    rk = key_.reshape(Tk, B * H, dh).transpose(1, 0, 2)
    rv = value.reshape(Tk, B * H, dh).transpose(1, 0, 2)

    aw = jnp.einsum('btd,bsd->bts', rq * mod.scaling, rk)
    aw = jnp.where(attention_mask[None], mod.negative_inf, aw)

    rcbl = Tq - jnp.max(lengths) - S                  # B > 1 padding-mask path
    klengths = lengths + M + rcbl
    pmask = jnp.arange(Tk)[None, :] >= klengths[:, None]
    aw = aw.reshape(B, H, Tq, Tk)
    aw = jnp.where(pmask[:, None, None, :], mod.negative_inf, aw)
    aw = aw.reshape(B * H, Tq, Tk)

    probs = jax.nn.softmax(aw, axis=-1)
    attn = jnp.einsum('bts,bsd->btd', probs, rv)
    attn = attn.transpose(1, 0, 2).reshape(Tq, B, D)
    out = attn @ mod.w_out.T + mod.b_out
    orc = out[:Tq - S]
    om = jnp.clip(out[Tq - S:], -10.0, 10.0)
    return orc, om[:-1]


# ----------------------------------------------------------------------------
if __name__ == "__main__":
    key = jax.random.PRNGKey(0)
    kp, ku, kr, ks, km = jax.random.split(key, 5)

    D, H = 32, 4
    B, U, R, S, M = 2, 8, 4, 2, 3
    Tq, Tk = R + U + S, M + R + U

    utterance = jax.random.normal(ku, (U, B, D), jnp.float32)
    right_context = jax.random.normal(kr, (R, B, D), jnp.float32)
    summary = jax.random.normal(ks, (S, B, D), jnp.float32)
    mems = jax.random.normal(km, (M, B, D), jnp.float32)
    lengths = jnp.array([U, U - 3], dtype=jnp.int32)

    # Simple deterministic attention mask: summary queries cannot attend to mems.
    attention_mask = jnp.zeros((Tq, Tk), dtype=bool).at[Tq - S:, :M].set(True)

    mod = EmformerAttention(D, H, key=kp)

    out, out_mems = mod.forward(utterance, lengths, right_context, summary,
                                mems, attention_mask)
    jax.block_until_ready((out, out_mems))

    ref_out, ref_mems = reference_forward(mod, utterance, lengths, right_context,
                                          summary, mems, attention_mask)
    np.testing.assert_allclose(np.asarray(out), np.asarray(ref_out),
                               rtol=2e-2, atol=2e-2)
    np.testing.assert_allclose(np.asarray(out_mems), np.asarray(ref_mems),
                               rtol=2e-2, atol=2e-2)
    assert out.shape == (R + U, B, D)
    assert out_mems.shape == (S - 1, B, D)
    print("KERNEL_OK")
</pallas_src>

<mosaic_0001>
module attributes {stable_mosaic.version = 11 : i64} {
  func.func @_emformer_fused_kernel(%arg0: i32, %arg1: i32, %arg2: memref<2xi32, #tpu.memory_space<smem>>, %arg3: memref<1x16x32xf32, #tpu.memory_space<vmem>>, %arg4: memref<1x128x32xf32, #tpu.memory_space<vmem>>, %arg5: memref<16x128xf32, #tpu.memory_space<vmem>>, %arg6: memref<32x32xf32, #tpu.memory_space<vmem>>, %arg7: memref<1x32xf32, #tpu.memory_space<vmem>>, %arg8: memref<32x32xf32, #tpu.memory_space<vmem>>, %arg9: memref<1x32xf32, #tpu.memory_space<vmem>>, %arg10: memref<32x32xf32, #tpu.memory_space<vmem>>, %arg11: memref<1x32xf32, #tpu.memory_space<vmem>>, %arg12: memref<32x32xf32, #tpu.memory_space<vmem>>, %arg13: memref<1x32xf32, #tpu.memory_space<vmem>>, %arg14: memref<1x16x32xf32, #tpu.memory_space<vmem>>, %arg15: memref<128x32xf32, #tpu.memory_space<vmem>>, %arg16: memref<128x32xf32, #tpu.memory_space<vmem>>, %arg17: memref<16x32xf32, #tpu.memory_space<vmem>>) attributes {dimension_semantics = [#tpu.dimension_semantics<parallel>, #tpu.dimension_semantics<arbitrary>], iteration_bounds = array<i64: 2, 1>, scalar_prefetch = 1 : i64, scratch_operands = 3 : i64, tpu.core_type = #tpu.core_type<tc>, window_params = [{transform_indices = @transform_0, window_bounds = array<i64: 1, 16, 32>}, {transform_indices = @transform_1, window_bounds = array<i64: 1, 128, 32>}, {transform_indices = @transform_2, window_bounds = array<i64: 16, 128>}, {pipeline_mode = #tpu.pipeline_mode<synchronous>, transform_indices = @transform_3, window_bounds = array<i64: 32, 32>}, {pipeline_mode = #tpu.pipeline_mode<synchronous>, transform_indices = @transform_4, window_bounds = array<i64: 1, 32>}, {pipeline_mode = #tpu.pipeline_mode<synchronous>, transform_indices = @transform_5, window_bounds = array<i64: 32, 32>}, {pipeline_mode = #tpu.pipeline_mode<synchronous>, transform_indices = @transform_6, window_bounds = array<i64: 1, 32>}, {pipeline_mode = #tpu.pipeline_mode<synchronous>, transform_indices = @transform_7, window_bounds = array<i64: 32, 32>}, {pipeline_mode = #tpu.pipeline_mode<synchronous>, transform_indices = @transform_8, window_bounds = array<i64: 1, 32>}, {pipeline_mode = #tpu.pipeline_mode<synchronous>, transform_indices = @transform_9, window_bounds = array<i64: 32, 32>}, {pipeline_mode = #tpu.pipeline_mode<synchronous>, transform_indices = @transform_10, window_bounds = array<i64: 1, 32>}, {transform_indices = @transform_11, window_bounds = array<i64: 1, 16, 32>}]} {
    %c0_i32 = arith.constant 0 : i32
    %0 = arith.cmpi eq, %arg1, %c0_i32 : i32
    %1 = arith.extui %0 : i1 to i32
    %c0_i32_0 = arith.constant 0 : i32
    %2 = arith.cmpi ne, %1, %c0_i32_0 : i32
    scf.if %2 {
      %c0_60 = arith.constant 0 : index
      %c0_61 = arith.constant 0 : index
      %c0_62 = arith.constant 0 : index
      %109 = vector.load %arg4[%c0_60, %c0_61, %c0_62] : memref<1x128x32xf32, #tpu.memory_space<vmem>>, vector<1x128x32xf32>
      %110 = vector.shape_cast %109 : vector<1x128x32xf32> to vector<128x32xf32>
      %c0_63 = arith.constant 0 : index
      %c0_64 = arith.constant 0 : index
      %111 = vector.load %arg8[%c0_63, %c0_64] : memref<32x32xf32, #tpu.memory_space<vmem>>, vector<32x32xf32>
      %cst_65 = arith.constant dense<0.000000e+00> : vector<128x32xf32>
      %112 = tpu.matmul %110, %111, %cst_65 {dimension_numbers = #tpu.dot_dimension_numbers<[1], [0], [0], [1], [0, 0, 1, 1], [], []>} : vector<128x32xf32>, vector<32x32xf32>, vector<128x32xf32> -> vector<128x32xf32>
      %c0_66 = arith.constant 0 : index
      %c0_67 = arith.constant 0 : index
      %113 = vector.load %arg9[%c0_66, %c0_67] : memref<1x32xf32, #tpu.memory_space<vmem>>, vector<1x32xf32>
      %114 = vector.broadcast %113 : vector<1x32xf32> to vector<128x32xf32>
      %115 = arith.addf %112, %114 : vector<128x32xf32>
      %c0_68 = arith.constant 0 : index
      %c0_69 = arith.constant 0 : index
      %116 = vector.load %arg15[%c0_68, %c0_69] : memref<128x32xf32, #tpu.memory_space<vmem>>, vector<128x32xf32>
      tpu.vector_store %arg15[%c0_68, %c0_69], %115 {strides = array<i32>} : memref<128x32xf32, #tpu.memory_space<vmem>>, vector<128x32xf32>,
      %c0_70 = arith.constant 0 : index
      %c0_71 = arith.constant 0 : index
      %117 = vector.load %arg10[%c0_70, %c0_71] : memref<32x32xf32, #tpu.memory_space<vmem>>, vector<32x32xf32>
      %cst_72 = arith.constant dense<0.000000e+00> : vector<128x32xf32>
      %118 = tpu.matmul %110, %117, %cst_72 {dimension_numbers = #tpu.dot_dimension_numbers<[1], [0], [0], [1], [0, 0, 1, 1], [], []>} : vector<128x32xf32>, vector<32x32xf32>, vector<128x32xf32> -> vector<128x32xf32>
      %c0_73 = arith.constant 0 : index
      %c0_74 = arith.constant 0 : index
      %119 = vector.load %arg11[%c0_73, %c0_74] : memref<1x32xf32, #tpu.memory_space<vmem>>, vector<1x32xf32>
      %120 = vector.broadcast %119 : vector<1x32xf32> to vector<128x32xf32>
      %121 = arith.addf %118, %120 : vector<128x32xf32>
      %c0_75 = arith.constant 0 : index
      %c0_76 = arith.constant 0 : index
      %122 = vector.load %arg16[%c0_75, %c0_76] : memref<128x32xf32, #tpu.memory_space<vmem>>, vector<128x32xf32>
      tpu.vector_store %arg16[%c0_75, %c0_76], %121 {strides = array<i32>} : memref<128x32xf32, #tpu.memory_space<vmem>>, vector<128x32xf32>,
    } else {
    }
    %c0 = arith.constant 0 : index
    %c0_1 = arith.constant 0 : index
    %c0_2 = arith.constant 0 : index
    %3 = vector.load %arg3[%c0, %c0_1, %c0_2] : memref<1x16x32xf32, #tpu.memory_space<vmem>>, vector<1x16x32xf32>
    %4 = vector.shape_cast %3 : vector<1x16x32xf32> to vector<16x32xf32>
    %c0_3 = arith.constant 0 : index
    %c0_4 = arith.constant 0 : index
    %5 = vector.load %arg6[%c0_3, %c0_4] : memref<32x32xf32, #tpu.memory_space<vmem>>, vector<32x32xf32>
    %cst = arith.constant dense<0.000000e+00> : vector<16x32xf32>
    %6 = tpu.matmul %4, %5, %cst {dimension_numbers = #tpu.dot_dimension_numbers<[1], [0], [0], [1], [0, 0, 1, 1], [], []>} : vector<16x32xf32>, vector<32x32xf32>, vector<16x32xf32> -> vector<16x32xf32>
    %c0_5 = arith.constant 0 : index
    %c0_6 = arith.constant 0 : index
    %7 = vector.load %arg7[%c0_5, %c0_6] : memref<1x32xf32, #tpu.memory_space<vmem>>, vector<1x32xf32>
    %8 = vector.broadcast %7 : vector<1x32xf32> to vector<16x32xf32>
    %9 = arith.addf %6, %8 : vector<16x32xf32>
    %c0_7 = arith.constant 0 : index
    %c0_8 = arith.constant 0 : index
    %10 = vector.load %arg5[%c0_7, %c0_8] : memref<16x128xf32, #tpu.memory_space<vmem>>, vector<16x128xf32>
    %11 = arith.index_cast %arg0 : i32 to index
    %12 = memref.load %arg2[%11] : memref<2xi32, #tpu.memory_space<smem>>
    %13 = tpu.iota {dimensions = array<i32: 1>} : vector<1x128xi32>
    %14 = vector.broadcast %12 : i32 to vector<1x128xi32>
    %15 = arith.cmpi sge, %13, %14 : vector<1x128xi32>
    %16 = vector.extract_strided_slice %9 {offsets = [0, 0], sizes = [16, 8], strides = [1, 1]} : vector<16x32xf32> to vector<16x8xf32>
    %c0_9 = arith.constant 0 : index
    %c0_10 = arith.constant 0 : index
    %17 = vector.load %arg15[%c0_9, %c0_10] : memref<128x32xf32, #tpu.memory_space<vmem>>, vector<128x8xf32>
    %c0_11 = arith.constant 0 : index
    %c0_12 = arith.constant 0 : index
    %18 = vector.load %arg16[%c0_11, %c0_12] : memref<128x32xf32, #tpu.memory_space<vmem>>, vector<128x8xf32>
    "tpu.trace_start"() <{level = 10 : i32, message = "qd,kd->qk"}> : () -> ()
    %cst_13 = arith.constant dense<0.000000e+00> : vector<16x128xf32>
    %19 = tpu.matmul %16, %17, %cst_13 {dimension_numbers = #tpu.dot_dimension_numbers<[1], [1], [0], [0], [0, 0, 1, 0], [], []>} : vector<16x8xf32>, vector<128x8xf32>, vector<16x128xf32> -> vector<16x128xf32>
    "tpu.trace_stop"() : () -> ()
    %20 = arith.addf %19, %10 : vector<16x128xf32>
    %cst_14 = arith.constant -1.000000e+08 : f32
    %21 = vector.shape_cast %15 : vector<1x128xi1> to vector<1x128xi1>
    %22 = vector.broadcast %21 : vector<1x128xi1> to vector<16x128xi1>
    %23 = vector.broadcast %cst_14 : f32 to vector<16x128xf32>
    %24 = arith.select %22, %23, %20 : vector<16x128xi1>, vector<16x128xf32>
    %cst_15 = arith.constant dense<0xFF800000> : vector<16xf32>
    %25 = vector.multi_reduction <maximumf>, %24, %cst_15 [1] : vector<16x128xf32> to vector<16xf32>
    %26 = vector.shape_cast %25 : vector<16xf32> to vector<16x1xf32>
    %27 = vector.broadcast %26 : vector<16x1xf32> to vector<16x128xf32>
    %28 = arith.subf %24, %27 : vector<16x128xf32>
    %29 = math.exp %28 : vector<16x128xf32>
    %cst_16 = arith.constant dense<0.000000e+00> : vector<16xf32>
    %30 = vector.multi_reduction <add>, %29, %cst_16 [1] : vector<16x128xf32> to vector<16xf32>
    %31 = vector.shape_cast %30 : vector<16xf32> to vector<16x1xf32>
    %32 = tpu.reciprocal %31 {approx = true} : vector<16x1xf32> -> vector<16x1xf32>
    %33 = vector.broadcast %32 : vector<16x1xf32> to vector<16x128xf32>
    %34 = arith.mulf %29, %33 : vector<16x128xf32>
    %cst_17 = arith.constant dense<0.000000e+00> : vector<16x8xf32>
    %35 = tpu.matmul %34, %18, %cst_17 {dimension_numbers = #tpu.dot_dimension_numbers<[1], [0], [0], [1], [0, 0, 1, 1], [], []>} : vector<16x128xf32>, vector<128x8xf32>, vector<16x8xf32> -> vector<16x8xf32>
    %c0_18 = arith.constant 0 : index
    %c0_19 = arith.constant 0 : index
    %36 = vector.load %arg17[%c0_18, %c0_19] : memref<16x32xf32, #tpu.memory_space<vmem>>, vector<16x8xf32>
    tpu.vector_store %arg17[%c0_18, %c0_19], %35 {strides = array<i32>} : memref<16x32xf32, #tpu.memory_space<vmem>>, vector<16x8xf32>,
    %37 = vector.extract_strided_slice %9 {offsets = [0, 8], sizes = [16, 8], strides = [1, 1]} : vector<16x32xf32> to vector<16x8xf32>
    %c0_20 = arith.constant 0 : index
    %c8 = arith.constant 8 : index
    %38 = vector.load %arg15[%c0_20, %c8] : memref<128x32xf32, #tpu.memory_space<vmem>>, vector<128x8xf32>
    %c0_21 = arith.constant 0 : index
    %c8_22 = arith.constant 8 : index
    %39 = vector.load %arg16[%c0_21, %c8_22] : memref<128x32xf32, #tpu.memory_space<vmem>>, vector<128x8xf32>
    "tpu.trace_start"() <{level = 10 : i32, message = "qd,kd->qk"}> : () -> ()
    %cst_23 = arith.constant dense<0.000000e+00> : vector<16x128xf32>
    %40 = tpu.matmul %37, %38, %cst_23 {dimension_numbers = #tpu.dot_dimension_numbers<[1], [1], [0], [0], [0, 0, 1, 0], [], []>} : vector<16x8xf32>, vector<128x8xf32>, vector<16x128xf32> -> vector<16x128xf32>
    "tpu.trace_stop"() : () -> ()
    %41 = arith.addf %40, %10 : vector<16x128xf32>
    %cst_24 = arith.constant -1.000000e+08 : f32
    %42 = vector.shape_cast %15 : vector<1x128xi1> to vector<1x128xi1>
    %43 = vector.broadcast %42 : vector<1x128xi1> to vector<16x128xi1>
    %44 = vector.broadcast %cst_24 : f32 to vector<16x128xf32>
    %45 = arith.select %43, %44, %41 : vector<16x128xi1>, vector<16x128xf32>
    %cst_25 = arith.constant dense<0xFF800000> : vector<16xf32>
    %46 = vector.multi_reduction <maximumf>, %45, %cst_25 [1] : vector<16x128xf32> to vector<16xf32>
    %47 = vector.shape_cast %46 : vector<16xf32> to vector<16x1xf32>
    %48 = vector.broadcast %47 : vector<16x1xf32> to vector<16x128xf32>
    %49 = arith.subf %45, %48 : vector<16x128xf32>
    %50 = math.exp %49 : vector<16x128xf32>
    %cst_26 = arith.constant dense<0.000000e+00> : vector<16xf32>
    %51 = vector.multi_reduction <add>, %50, %cst_26 [1] : vector<16x128xf32> to vector<16xf32>
    %52 = vector.shape_cast %51 : vector<16xf32> to vector<16x1xf32>
    %53 = tpu.reciprocal %52 {approx = true} : vector<16x1xf32> -> vector<16x1xf32>
    %54 = vector.broadcast %53 : vector<16x1xf32> to vector<16x128xf32>
    %55 = arith.mulf %50, %54 : vector<16x128xf32>
    %cst_27 = arith.constant dense<0.000000e+00> : vector<16x8xf32>
    %56 = tpu.matmul %55, %39, %cst_27 {dimension_numbers = #tpu.dot_dimension_numbers<[1], [0], [0], [1], [0, 0, 1, 1], [], []>} : vector<16x128xf32>, vector<128x8xf32>, vector<16x8xf32> -> vector<16x8xf32>
    %c0_28 = arith.constant 0 : index
    %c8_29 = arith.constant 8 : index
    %57 = vector.load %arg17[%c0_28, %c8_29] : memref<16x32xf32, #tpu.memory_space<vmem>>, vector<16x8xf32>
    tpu.vector_store %arg17[%c0_28, %c8_29], %56 {strides = array<i32>} : memref<16x32xf32, #tpu.memory_space<vmem>>, vector<16x8xf32>,
    %58 = vector.extract_strided_slice %9 {offsets = [0, 16], sizes = [16, 8], strides = [1, 1]} : vector<16x32xf32> to vector<16x8xf32>
    %c0_30 = arith.constant 0 : index
    %c16 = arith.constant 16 : index
    %59 = vector.load %arg15[%c0_30, %c16] : memref<128x32xf32, #tpu.memory_space<vmem>>, vector<128x8xf32>
    %c0_31 = arith.constant 0 : index
    %c16_32 = arith.constant 16 : index
    %60 = vector.load %arg16[%c0_31, %c16_32] : memref<128x32xf32, #tpu.memory_space<vmem>>, vector<128x8xf32>
    "tpu.trace_start"() <{level = 10 : i32, message = "qd,kd->qk"}> : () -> ()
    %cst_33 = arith.constant dense<0.000000e+00> : vector<16x128xf32>
    %61 = tpu.matmul %58, %59, %cst_33 {dimension_numbers = #tpu.dot_dimension_numbers<[1], [1], [0], [0], [0, 0, 1, 0], [], []>} : vector<16x8xf32>, vector<128x8xf32>, vector<16x128xf32> -> vector<16x128xf32>
    "tpu.trace_stop"() : () -> ()
    %62 = arith.addf %61, %10 : vector<16x128xf32>
    %cst_34 = arith.constant -1.000000e+08 : f32
    %63 = vector.shape_cast %15 : vector<1x128xi1> to vector<1x128xi1>
    %64 = vector.broadcast %63 : vector<1x128xi1> to vector<16x128xi1>
    %65 = vector.broadcast %cst_34 : f32 to vector<16x128xf32>
    %66 = arith.select %64, %65, %62 : vector<16x128xi1>, vector<16x128xf32>
    %cst_35 = arith.constant dense<0xFF800000> : vector<16xf32>
    %67 = vector.multi_reduction <maximumf>, %66, %cst_35 [1] : vector<16x128xf32> to vector<16xf32>
    %68 = vector.shape_cast %67 : vector<16xf32> to vector<16x1xf32>
    %69 = vector.broadcast %68 : vector<16x1xf32> to vector<16x128xf32>
    %70 = arith.subf %66, %69 : vector<16x128xf32>
    %71 = math.exp %70 : vector<16x128xf32>
    %cst_36 = arith.constant dense<0.000000e+00> : vector<16xf32>
    %72 = vector.multi_reduction <add>, %71, %cst_36 [1] : vector<16x128xf32> to vector<16xf32>
    %73 = vector.shape_cast %72 : vector<16xf32> to vector<16x1xf32>
    %74 = tpu.reciprocal %73 {approx = true} : vector<16x1xf32> -> vector<16x1xf32>
    %75 = vector.broadcast %74 : vector<16x1xf32> to vector<16x128xf32>
    %76 = arith.mulf %71, %75 : vector<16x128xf32>
    %cst_37 = arith.constant dense<0.000000e+00> : vector<16x8xf32>
    %77 = tpu.matmul %76, %60, %cst_37 {dimension_numbers = #tpu.dot_dimension_numbers<[1], [0], [0], [1], [0, 0, 1, 1], [], []>} : vector<16x128xf32>, vector<128x8xf32>, vector<16x8xf32> -> vector<16x8xf32>
    %c0_38 = arith.constant 0 : index
    %c16_39 = arith.constant 16 : index
    %78 = vector.load %arg17[%c0_38, %c16_39] : memref<16x32xf32, #tpu.memory_space<vmem>>, vector<16x8xf32>
    tpu.vector_store %arg17[%c0_38, %c16_39], %77 {strides = array<i32>} : memref<16x32xf32, #tpu.memory_space<vmem>>, vector<16x8xf32>,
    %79 = vector.extract_strided_slice %9 {offsets = [0, 24], sizes = [16, 8], strides = [1, 1]} : vector<16x32xf32> to vector<16x8xf32>
    %c0_40 = arith.constant 0 : index
    %c24 = arith.constant 24 : index
    %80 = vector.load %arg15[%c0_40, %c24] : memref<128x32xf32, #tpu.memory_space<vmem>>, vector<128x8xf32>
    %c0_41 = arith.constant 0 : index
    %c24_42 = arith.constant 24 : index
    %81 = vector.load %arg16[%c0_41, %c24_42] : memref<128x32xf32, #tpu.memory_space<vmem>>, vector<128x8xf32>
    "tpu.trace_start"() <{level = 10 : i32, message = "qd,kd->qk"}> : () -> ()
    %cst_43 = arith.constant dense<0.000000e+00> : vector<16x128xf32>
    %82 = tpu.matmul %79, %80, %cst_43 {dimension_numbers = #tpu.dot_dimension_numbers<[1], [1], [0], [0], [0, 0, 1, 0], [], []>} : vector<16x8xf32>, vector<128x8xf32>, vector<16x128xf32> -> vector<16x128xf32>
    "tpu.trace_stop"() : () -> ()
    %83 = arith.addf %82, %10 : vector<16x128xf32>
    %cst_44 = arith.constant -1.000000e+08 : f32
    %84 = vector.shape_cast %15 : vector<1x128xi1> to vector<1x128xi1>
    %85 = vector.broadcast %84 : vector<1x128xi1> to vector<16x128xi1>
    %86 = vector.broadcast %cst_44 : f32 to vector<16x128xf32>
    %87 = arith.select %85, %86, %83 : vector<16x128xi1>, vector<16x128xf32>
    %cst_45 = arith.constant dense<0xFF800000> : vector<16xf32>
    %88 = vector.multi_reduction <maximumf>, %87, %cst_45 [1] : vector<16x128xf32> to vector<16xf32>
    %89 = vector.shape_cast %88 : vector<16xf32> to vector<16x1xf32>
    %90 = vector.broadcast %89 : vector<16x1xf32> to vector<16x128xf32>
    %91 = arith.subf %87, %90 : vector<16x128xf32>
    %92 = math.exp %91 : vector<16x128xf32>
    %cst_46 = arith.constant dense<0.000000e+00> : vector<16xf32>
    %93 = vector.multi_reduction <add>, %92, %cst_46 [1] : vector<16x128xf32> to vector<16xf32>
    %94 = vector.shape_cast %93 : vector<16xf32> to vector<16x1xf32>
    %95 = tpu.reciprocal %94 {approx = true} : vector<16x1xf32> -> vector<16x1xf32>
    %96 = vector.broadcast %95 : vector<16x1xf32> to vector<16x128xf32>
    %97 = arith.mulf %92, %96 : vector<16x128xf32>
    %cst_47 = arith.constant dense<0.000000e+00> : vector<16x8xf32>
    %98 = tpu.matmul %97, %81, %cst_47 {dimension_numbers = #tpu.dot_dimension_numbers<[1], [0], [0], [1], [0, 0, 1, 1], [], []>} : vector<16x128xf32>, vector<128x8xf32>, vector<16x8xf32> -> vector<16x8xf32>
    %c0_48 = arith.constant 0 : index
    %c24_49 = arith.constant 24 : index
    %99 = vector.load %arg17[%c0_48, %c24_49] : memref<16x32xf32, #tpu.memory_space<vmem>>, vector<16x8xf32>
    tpu.vector_store %arg17[%c0_48, %c24_49], %98 {strides = array<i32>} : memref<16x32xf32, #tpu.memory_space<vmem>>, vector<16x8xf32>,
    %c0_50 = arith.constant 0 : index
    %c0_51 = arith.constant 0 : index
    %100 = vector.load %arg17[%c0_50, %c0_51] : memref<16x32xf32, #tpu.memory_space<vmem>>, vector<16x32xf32>
    %c0_52 = arith.constant 0 : index
    %c0_53 = arith.constant 0 : index
    %101 = vector.load %arg12[%c0_52, %c0_53] : memref<32x32xf32, #tpu.memory_space<vmem>>, vector<32x32xf32>
    %cst_54 = arith.constant dense<0.000000e+00> : vector<16x32xf32>
    %102 = tpu.matmul %100, %101, %cst_54 {dimension_numbers = #tpu.dot_dimension_numbers<[1], [0], [0], [1], [0, 0, 1, 1], [], []>} : vector<16x32xf32>, vector<32x32xf32>, vector<16x32xf32> -> vector<16x32xf32>
    %c0_55 = arith.constant 0 : index
    %c0_56 = arith.constant 0 : index
    %103 = vector.load %arg13[%c0_55, %c0_56] : memref<1x32xf32, #tpu.memory_space<vmem>>, vector<1x32xf32>
    %104 = vector.broadcast %103 : vector<1x32xf32> to vector<16x32xf32>
    %105 = arith.addf %102, %104 : vector<16x32xf32>
    %c0_57 = arith.constant 0 : index
    %c0_58 = arith.constant 0 : index
    %c0_59 = arith.constant 0 : index
    %106 = vector.load %arg14[%c0_57, %c0_58, %c0_59] : memref<1x16x32xf32, #tpu.memory_space<vmem>>, vector<1x16x32xf32>
    %107 = vector.shape_cast %106 : vector<1x16x32xf32> to vector<16x32xf32>
    %108 = vector.shape_cast %105 : vector<16x32xf32> to vector<1x16x32xf32>
    tpu.vector_store %arg14[%c0_57, %c0_58, %c0_59], %108 {strides = array<i32>} : memref<1x16x32xf32, #tpu.memory_space<vmem>>, vector<1x16x32xf32>,
    return
  }
  func.func @transform_0(%arg0: i32, %arg1: i32, %arg2: memref<2xi32, #tpu.memory_space<smem>>) -> (i32, i32, i32) {
    %c0_i32 = arith.constant 0 : i32
    %c0_i32_0 = arith.constant 0 : i32
    return %arg0, %arg1, %c0_i32 : i32, i32, i32
  }
  func.func @transform_1(%arg0: i32, %arg1: i32, %arg2: memref<2xi32, #tpu.memory_space<smem>>) -> (i32, i32, i32) {
    %c0_i32 = arith.constant 0 : i32
    %c0_i32_0 = arith.constant 0 : i32
    %c0_i32_1 = arith.constant 0 : i32
    return %arg0, %c0_i32, %c0_i32_0 : i32, i32, i32
  }
  func.func @transform_2(%arg0: i32, %arg1: i32, %arg2: memref<2xi32, #tpu.memory_space<smem>>) -> (i32, i32) {
    %c0_i32 = arith.constant 0 : i32
    %c0_i32_0 = arith.constant 0 : i32
    return %arg1, %c0_i32 : i32, i32
  }
  func.func @transform_3(%arg0: i32, %arg1: i32, %arg2: memref<2xi32, #tpu.memory_space<smem>>) -> (i32, i32) {
    %c0_i32 = arith.constant 0 : i32
    %c0_i32_0 = arith.constant 0 : i32
    %c0_i32_1 = arith.constant 0 : i32
    return %c0_i32, %c0_i32_0 : i32, i32
  }
  func.func @transform_4(%arg0: i32, %arg1: i32, %arg2: memref<2xi32, #tpu.memory_space<smem>>) -> (i32, i32) {
    %c0_i32 = arith.constant 0 : i32
    %c0_i32_0 = arith.constant 0 : i32
    %c0_i32_1 = arith.constant 0 : i32
    return %c0_i32, %c0_i32_0 : i32, i32
  }
  func.func @transform_5(%arg0: i32, %arg1: i32, %arg2: memref<2xi32, #tpu.memory_space<smem>>) -> (i32, i32) {
    %c0_i32 = arith.constant 0 : i32
    %c0_i32_0 = arith.constant 0 : i32
    %c0_i32_1 = arith.constant 0 : i32
    return %c0_i32, %c0_i32_0 : i32, i32
  }
  func.func @transform_6(%arg0: i32, %arg1: i32, %arg2: memref<2xi32, #tpu.memory_space<smem>>) -> (i32, i32) {
    %c0_i32 = arith.constant 0 : i32
    %c0_i32_0 = arith.constant 0 : i32
    %c0_i32_1 = arith.constant 0 : i32
    return %c0_i32, %c0_i32_0 : i32, i32
  }
  func.func @transform_7(%arg0: i32, %arg1: i32, %arg2: memref<2xi32, #tpu.memory_space<smem>>) -> (i32, i32) {
    %c0_i32 = arith.constant 0 : i32
    %c0_i32_0 = arith.constant 0 : i32
    %c0_i32_1 = arith.constant 0 : i32
    return %c0_i32, %c0_i32_0 : i32, i32
  }
  func.func @transform_8(%arg0: i32, %arg1: i32, %arg2: memref<2xi32, #tpu.memory_space<smem>>) -> (i32, i32) {
    %c0_i32 = arith.constant 0 : i32
    %c0_i32_0 = arith.constant 0 : i32
    %c0_i32_1 = arith.constant 0 : i32
    return %c0_i32, %c0_i32_0 : i32, i32
  }
  func.func @transform_9(%arg0: i32, %arg1: i32, %arg2: memref<2xi32, #tpu.memory_space<smem>>) -> (i32, i32) {
    %c0_i32 = arith.constant 0 : i32
    %c0_i32_0 = arith.constant 0 : i32
    %c0_i32_1 = arith.constant 0 : i32
    return %c0_i32, %c0_i32_0 : i32, i32
  }
  func.func @transform_10(%arg0: i32, %arg1: i32, %arg2: memref<2xi32, #tpu.memory_space<smem>>) -> (i32, i32) {
    %c0_i32 = arith.constant 0 : i32
    %c0_i32_0 = arith.constant 0 : i32
    %c0_i32_1 = arith.constant 0 : i32
    return %c0_i32, %c0_i32_0 : i32, i32
  }
  func.func @transform_11(%arg0: i32, %arg1: i32, %arg2: memref<2xi32, #tpu.memory_space<smem>>) -> (i32, i32, i32) {
    %c0_i32 = arith.constant 0 : i32
    %c0_i32_0 = arith.constant 0 : i32
    return %arg0, %arg1, %c0_i32 : i32, i32, i32
  }
}

</mosaic_0001>

<llo_original>
// kernel: tpu_custom_call.1
$region0: #{tpu_custom_call.1}
  #allocation0 [shape = 'u32[]', space=smem, size = 0x4, offset = 0x4, fixed_abs, tag = 'smem constant byte address 0x4 - core index']
  #allocation1 [shape = 'u32[144,128]{1,0:T(1,128)}', space=vmem, size = 0x12000, scoped, tag = 'internal scratch']
  #allocation2 [shape = 'f32[128,32]{1,0:T(8,128)}', space=vmem, size = 0x10000, scoped, tag = 'scratch operand']
  #allocation3 [shape = 'f32[128,32]{1,0:T(8,128)}', space=vmem, size = 0x10000, scoped, tag = 'scratch operand']
  #allocation4 [shape = 'f32[16,32]{1,0:T(8,128)}', space=vmem, size = 0x2000, scoped, tag = 'scratch operand']
  #allocation5 [shape = 's32[1]{0}', space=sflag, size = 0x4, scoped, tag = 'scoped memory for tpu_custom_call.1']
  #allocation6 [shape = 'u8[512]{0}', space=smem, size = 0x200, scoped, tag = 'prefetched SMEM operand 0']
  %s0 = inlined_call_operand.vmem [shape: s32[2], index: 0, kind: input, shape index: {}]
  %s1 = inlined_call_operand.vmem [shape: f32[2,16,32], index: 1, kind: input, shape index: {}]
  %s2 = inlined_call_operand.vmem [shape: f32[2,128,32], index: 2, kind: input, shape index: {}]
  %s3 = inlined_call_operand.vmem [shape: f32[16,128], index: 3, kind: input, shape index: {}]
  %s4 = inlined_call_operand.vmem [shape: f32[32,32], index: 4, kind: input, shape index: {}]
  %s5 = inlined_call_operand.vmem [shape: f32[1,32], index: 5, kind: input, shape index: {}]
  %s6 = inlined_call_operand.vmem [shape: f32[32,32], index: 6, kind: input, shape index: {}]
  %s7 = inlined_call_operand.vmem [shape: f32[1,32], index: 7, kind: input, shape index: {}]
  %s8 = inlined_call_operand.vmem [shape: f32[32,32], index: 8, kind: input, shape index: {}]
  %s9 = inlined_call_operand.vmem [shape: f32[1,32], index: 9, kind: input, shape index: {}]
  %s10 = inlined_call_operand.vmem [shape: f32[32,32], index: 10, kind: input, shape index: {}]
  %s11 = inlined_call_operand.vmem [shape: f32[1,32], index: 11, kind: input, shape index: {}]
  %s12 = inlined_call_operand.hbm [shape: f32[2,16,32], index: 12, kind: output, shape index: {}]
  %s13 = sld [smem:[#allocation0]]
  $region81: #{tpu_custom_call.1} parent=0
    _
  %s15 = ssub.s32 1, %s13
  %s16 = scalar_select 0, %s15, %s13
  %s17 = sshll.u32 %s0, 4
  %s18 = int_to_ptr.vmem [resolvable:$true] %s17
  %20 = dma.vmem_to_smem %s18, 16, [#allocation6], [#allocation5]
  %21 = dma.done [#allocation5], 16
  %22 = sfence
  $region1: #{tpu_custom_call.1} parent=0
    #allocation7 [shape = 'u8[16384]{0}', space=vmem, size = 0x4000, scoped, tag = 'output window, operand 0']
    #allocation8 [shape = 's32[2]{0}', space=sflag, size = 0x8, scoped, tag = 'scoped memory for tpu_custom_call.1']
    %23 = vsyncpa [#allocation8], 0
    %s24 = scalar_lea.sflag [#allocation8], 1
    %25 = vsyncpa %s24, 0
    loop: start=0, step=1, limit=4
    $region2: #{tpu_custom_call.1} parent=1 // loop_pre_header
      _
    $region3: #{tpu_custom_call.1} parent=1 // loop_header
      %s27 = sphi 0, %s31
      %p28 = scmp.ge.s32.totalorder %s27, 4
      %s34 = sphi 0, %s46
      %s35 = sphi 0, %s42
      %s36 = sphi 0, %s34
      %s37 = sphi 0, %s35
      %s38 = sphi 0, %s36
      %s39 = sphi 0, %s37
      %s51 = sphi 0, %s53
      %s54 = sphi 0, %s51
      %s55 = sphi 0, %s54
      %s71 = sphi 0, %s55
      %s77 = sphi 0, %s79
      %s80 = sphi 0, %s77
      %s81 = sphi 0, %s80
      %s97 = sphi 0, %s81
      %s103 = sphi 0, %s105
      %s106 = sphi 0, %s103
      %s107 = sphi 0, %s106
      %s123 = sphi 0, %s107
      %s127 = sphi 0, %s127
      %s129 = sphi 0, %s127
      %s130 = sphi 0, %s129
      %s144 = sphi 0, %s130
      %s148 = sphi 0, %s148
      %s150 = sphi 0, %s148
      %s151 = sphi 0, %s150
      %s165 = sphi 0, %s151
      %s169 = sphi 0, %s169
      %s171 = sphi 0, %s169
      %s172 = sphi 0, %s171
      %s186 = sphi 0, %s172
      %s190 = sphi 0, %s190
      %s192 = sphi 0, %s190
      %s193 = sphi 0, %s192
      %s207 = sphi 0, %s193
      %s211 = sphi 0, %s211
      %s213 = sphi 0, %s211
      %s214 = sphi 0, %s213
      %s228 = sphi 0, %s214
      %s232 = sphi 0, %s232
      %s234 = sphi 0, %s232
      %s235 = sphi 0, %s234
      %s249 = sphi 0, %s235
      %s253 = sphi 0, %s253
      %s255 = sphi 0, %s253
      %s256 = sphi 0, %s255
      %s270 = sphi 0, %s256
      %s274 = sphi 0, %s274
      %s276 = sphi 0, %s274
      %s277 = sphi 0, %s276
      %s291 = sphi 0, %s277
      %s299 = sphi 0, %s301
      %s302 = sphi 0, %s299
      %s303 = sphi 0, %s302
      %s319 = sphi 0, %s303
    $region4: #{tpu_custom_call.1} parent=1 // loop_header_branch
      %30 = sbr.rel (%p28) target = $region8
    $region5: #{tpu_custom_call.1} parent=1 // loop_body
      %s32 = ssub.s32 %s27, 1
      %s33 = ssub.s32 %s27, 2
      %s40 = sadd.s32 1, %s35
      %p41 = scmp.ge.s32.totalorder %s40, 1
      %s42 = scalar_select %p41, 0, %s40
      %s43 = sadd.s32 1, %s34
      %s44 = scalar_select %p41, %s43, %s34
      %p45 = scmp.ge.s32.totalorder %s44, 2
      %s46 = scalar_select %p45, 0, %s44
      %s47 = ssub.s32 %s34, %s46
      %s48 = ssub.s32 %s35, %s42
      %s49 = sor.u32 %s47, %s48
      %p50 = scmp.eq.s32.totalorder %s49, 0
      %s52 = sadd.s32 %s51, 1
      %s53 = scalar_select %p50, %s51, %s52
      %p56 = pneg %p50
      %p57 = scmp.eq.s32.totalorder %s27, 1
      %p58 = por %p56, %p57
      %p59 = scmp.ne.s32.totalorder %s51, %s54
      %p60 = scmp.eq.s32.totalorder %s27, 0
      %p61 = por %p59, %p60
      %p62 = scmp.ne.s32.totalorder %s51, %s54
      %p63 = scmp.eq.s32.totalorder %s32, 1
      %p64 = por %p62, %p63
      %p65 = scmp.ne.s32.totalorder %s54, %s55
      %p66 = scmp.eq.s32.totalorder %s32, 0
      %p67 = por %p65, %p66
      %p68 = scmp.ne.s32.totalorder %s54, %s55
      %p69 = scmp.eq.s32.totalorder %s33, 1
      %p70 = por %p68, %p69
      %p72 = scmp.ne.s32.totalorder %s55, %s71
      %p73 = scmp.eq.s32.totalorder %s33, 0
      %p74 = por %p72, %p73
      %s75 = ssub.s32 %s34, %s46
      %p76 = scmp.eq.s32.totalorder %s75, 0
      %s78 = sadd.s32 %s77, 1
      %s79 = scalar_select %p76, %s77, %s78
      %p82 = pneg %p76
      %p83 = scmp.eq.s32.totalorder %s27, 1
      %p84 = por %p82, %p83
      %p85 = scmp.ne.s32.totalorder %s77, %s80
      %p86 = scmp.eq.s32.totalorder %s27, 0
      %p87 = por %p85, %p86
      %p88 = scmp.ne.s32.totalorder %s77, %s80
      %p89 = scmp.eq.s32.totalorder %s32, 1
      %p90 = por %p88, %p89
      %p91 = scmp.ne.s32.totalorder %s80, %s81
      %p92 = scmp.eq.s32.totalorder %s32, 0
      %p93 = por %p91, %p92
      %p94 = scmp.ne.s32.totalorder %s80, %s81
      %p95 = scmp.eq.s32.totalorder %s33, 1
      %p96 = por %p94, %p95
      %p98 = scmp.ne.s32.totalorder %s81, %s97
      %p99 = scmp.eq.s32.totalorder %s33, 0
      %p100 = por %p98, %p99
      %s101 = ssub.s32 %s35, %s42
      %p102 = scmp.eq.s32.totalorder %s101, 0
      %s104 = sadd.s32 %s103, 1
      %s105 = scalar_select %p102, %s103, %s104
      %p108 = pneg %p102
      %p109 = scmp.eq.s32.totalorder %s27, 1
      %p110 = por %p108, %p109
      %p111 = scmp.ne.s32.totalorder %s103, %s106
      %p112 = scmp.eq.s32.totalorder %s27, 0
      %p113 = por %p111, %p112
      %p114 = scmp.ne.s32.totalorder %s103, %s106
      %p115 = scmp.eq.s32.totalorder %s32, 1
      %p116 = por %p114, %p115
      %p117 = scmp.ne.s32.totalorder %s106, %s107
      %p118 = scmp.eq.s32.totalorder %s32, 0
      %p119 = por %p117, %p118
      %p120 = scmp.ne.s32.totalorder %s106, %s107
      %p121 = scmp.eq.s32.totalorder %s33, 1
      %p122 = por %p120, %p121
      %p124 = scmp.ne.s32.totalorder %s107, %s123
      %p125 = scmp.eq.s32.totalorder %s33, 0
      %p126 = por %p124, %p125
      %s128 = sadd.s32 %s127, 1
      %p131 = scmp.eq.s32.totalorder %s27, 1
      %p132 = scmp.ne.s32.totalorder %s127, %s129
      %p133 = scmp.eq.s32.totalorder %s27, 0
      %p134 = por %p132, %p133
      %p135 = scmp.ne.s32.totalorder %s127, %s129
      %p136 = scmp.eq.s32.totalorder %s32, 1
      %p137 = por %p135, %p136
      %p138 = scmp.ne.s32.totalorder %s129, %s130
      %p139 = scmp.eq.s32.totalorder %s32, 0
      %p140 = por %p138, %p139
      %p141 = scmp.ne.s32.totalorder %s129, %s130
      %p142 = scmp.eq.s32.totalorder %s33, 1
      %p143 = por %p141, %p142
      %p145 = scmp.ne.s32.totalorder %s130, %s144
      %p146 = scmp.eq.s32.totalorder %s33, 0
      %p147 = por %p145, %p146
      %s149 = sadd.s32 %s148, 1
      %p152 = scmp.eq.s32.totalorder %s27, 1
      %p153 = scmp.ne.s32.totalorder %s148, %s150
      %p154 = scmp.eq.s32.totalorder %s27, 0
      %p155 = por %p153, %p154
      %p156 = scmp.ne.s32.totalorder %s148, %s150
      %p157 = scmp.eq.s32.totalorder %s32, 1
      %p158 = por %p156, %p157
      %p159 = scmp.ne.s32.totalorder %s150, %s151
      %p160 = scmp.eq.s32.totalorder %s32, 0
      %p161 = por %p159, %p160
      %p162 = scmp.ne.s32.totalorder %s150, %s151
      %p163 = scmp.eq.s32.totalorder %s33, 1
      %p164 = por %p162, %p163
      %p166 = scmp.ne.s32.totalorder %s151, %s165
      %p167 = scmp.eq.s32.totalorder %s33, 0
      %p168 = por %p166, %p167
      %s170 = sadd.s32 %s169, 1
      %p173 = scmp.eq.s32.totalorder %s27, 1
      %p174 = scmp.ne.s32.totalorder %s169, %s171
      %p175 = scmp.eq.s32.totalorder %s27, 0
      %p176 = por %p174, %p175
      %p177 = scmp.ne.s32.totalorder %s169, %s171
      %p178 = scmp.eq.s32.totalorder %s32, 1
      %p179 = por %p177, %p178
      %p180 = scmp.ne.s32.totalorder %s171, %s172
      %p181 = scmp.eq.s32.totalorder %s32, 0
      %p182 = por %p180, %p181
      %p183 = scmp.ne.s32.totalorder %s171, %s172
      %p184 = scmp.eq.s32.totalorder %s33, 1
      %p185 = por %p183, %p184
      %p187 = scmp.ne.s32.totalorder %s172, %s186
      %p188 = scmp.eq.s32.totalorder %s33, 0
      %p189 = por %p187, %p188
      %s191 = sadd.s32 %s190, 1
      %p194 = scmp.eq.s32.totalorder %s27, 1
      %p195 = scmp.ne.s32.totalorder %s190, %s192
      %p196 = scmp.eq.s32.totalorder %s27, 0
      %p197 = por %p195, %p196
      %p198 = scmp.ne.s32.totalorder %s190, %s192
      %p199 = scmp.eq.s32.totalorder %s32, 1
      %p200 = por %p198, %p199
      %p201 = scmp.ne.s32.totalorder %s192, %s193
      %p202 = scmp.eq.s32.totalorder %s32, 0
      %p203 = por %p201, %p202
      %p204 = scmp.ne.s32.totalorder %s192, %s193
      %p205 = scmp.eq.s32.totalorder %s33, 1
      %p206 = por %p204, %p205
      %p208 = scmp.ne.s32.totalorder %s193, %s207
      %p209 = scmp.eq.s32.totalorder %s33, 0
      %p210 = por %p208, %p209
      %s212 = sadd.s32 %s211, 1
      %p215 = scmp.eq.s32.totalorder %s27, 1
      %p216 = scmp.ne.s32.totalorder %s211, %s213
      %p217 = scmp.eq.s32.totalorder %s27, 0
      %p218 = por %p216, %p217
      %p219 = scmp.ne.s32.totalorder %s211, %s213
      %p220 = scmp.eq.s32.totalorder %s32, 1
      %p221 = por %p219, %p220
      %p222 = scmp.ne.s32.totalorder %s213, %s214
      %p223 = scmp.eq.s32.totalorder %s32, 0
      %p224 = por %p222, %p223
      %p225 = scmp.ne.s32.totalorder %s213, %s214
      %p226 = scmp.eq.s32.totalorder %s33, 1
      %p227 = por %p225, %p226
      %p229 = scmp.ne.s32.totalorder %s214, %s228
      %p230 = scmp.eq.s32.totalorder %s33, 0
      %p231 = por %p229, %p230
      %s233 = sadd.s32 %s232, 1
      %p236 = scmp.eq.s32.totalorder %s27, 1
      %p237 = scmp.ne.s32.totalorder %s232, %s234
      %p238 = scmp.eq.s32.totalorder %s27, 0
      %p239 = por %p237, %p238
      %p240 = scmp.ne.s32.totalorder %s232, %s234
      %p241 = scmp.eq.s32.totalorder %s32, 1
      %p242 = por %p240, %p241
      %p243 = scmp.ne.s32.totalorder %s234, %s235
      %p244 = scmp.eq.s32.totalorder %s32, 0
      %p245 = por %p243, %p244
      %p246 = scmp.ne.s32.totalorder %s234, %s235
      %p247 = scmp.eq.s32.totalorder %s33, 1
      %p248 = por %p246, %p247
      %p250 = scmp.ne.s32.totalorder %s235, %s249
      %p251 = scmp.eq.s32.totalorder %s33, 0
      %p252 = por %p250, %p251
      %s254 = sadd.s32 %s253, 1
      %p257 = scmp.eq.s32.totalorder %s27, 1
      %p258 = scmp.ne.s32.totalorder %s253, %s255
      %p259 = scmp.eq.s32.totalorder %s27, 0
      %p260 = por %p258, %p259
      %p261 = scmp.ne.s32.totalorder %s253, %s255
      %p262 = scmp.eq.s32.totalorder %s32, 1
      %p263 = por %p261, %p262
      %p264 = scmp.ne.s32.totalorder %s255, %s256
      %p265 = scmp.eq.s32.totalorder %s32, 0
      %p266 = por %p264, %p265
      %p267 = scmp.ne.s32.totalorder %s255, %s256
      %p268 = scmp.eq.s32.totalorder %s33, 1
      %p269 = por %p267, %p268
      %p271 = scmp.ne.s32.totalorder %s256, %s270
      %p272 = scmp.eq.s32.totalorder %s33, 0
      %p273 = por %p271, %p272
      %s275 = sadd.s32 %s274, 1
      %p278 = scmp.eq.s32.totalorder %s27, 1
      %p279 = scmp.ne.s32.totalorder %s274, %s276
      %p280 = scmp.eq.s32.totalorder %s27, 0
      %p281 = por %p279, %p280
      %p282 = scmp.ne.s32.totalorder %s274, %s276
      %p283 = scmp.eq.s32.totalorder %s32, 1
      %p284 = por %p282, %p283
      %p285 = scmp.ne.s32.totalorder %s276, %s277
      %p286 = scmp.eq.s32.totalorder %s32, 0
      %p287 = por %p285, %p286
      %p288 = scmp.ne.s32.totalorder %s276, %s277
      %p289 = scmp.eq.s32.totalorder %s33, 1
      %p290 = por %p288, %p289
      %p292 = scmp.ne.s32.totalorder %s277, %s291
      %p293 = scmp.eq.s32.totalorder %s33, 0
      %p294 = por %p292, %p293
      %s295 = ssub.s32 %s34, %s46
      %s296 = ssub.s32 %s35, %s42
      %s297 = sor.u32 %s295, %s296
      %p298 = scmp.eq.s32.totalorder %s297, 0
      %s300 = sadd.s32 %s299, 1
      %s301 = scalar_select %p298, %s299, %s300
      %p304 = pneg %p298
      %p305 = scmp.eq.s32.totalorder %s27, 1
      %p306 = por %p304, %p305
      %p307 = scmp.ne.s32.totalorder %s299, %s302
      %p308 = scmp.eq.s32.totalorder %s27, 0
      %p309 = por %p307, %p308
      %p310 = scmp.ne.s32.totalorder %s299, %s302
      %p311 = scmp.eq.s32.totalorder %s32, 1
      %p312 = por %p310, %p311
      %p313 = scmp.ne.s32.totalorder %s302, %s303
      %p314 = scmp.eq.s32.totalorder %s32, 0
      %p315 = por %p313, %p314
      %p316 = scmp.ne.s32.totalorder %s302, %s303
      %p317 = scmp.eq.s32.totalorder %s33, 1
      %p318 = por %p316, %p317
      %p320 = scmp.ne.s32.totalorder %s303, %s319
      %p321 = scmp.eq.s32.totalorder %s33, 0
      %p322 = por %p320, %p321
      %p323 = scmp.le.s32.totalorder 1, %s27
      %p324 = scmp.lt.s32.totalorder %s27, 3
      %p325 = pnand %p323, %p324
      %p326 = pneg %p325
      // Predicated region
      $region9: #{tpu_custom_call.1} parent=5 // pred_check
        _
      $region10: #{tpu_custom_call.1} parent=5 // pred_check_branch
        %328 = sbr.rel (%p325) target = $region12
      $region11: #{tpu_custom_call.1} parent=5 // pred_region
        %s329 = ssub.s32 %s27, 1
        // Predicated region
        $region13: #{tpu_custom_call.1} parent=11 // pred_check
          %p330 = pneg %p119
        $region14: #{tpu_custom_call.1} parent=11 // pred_check_branch
          %332 = sbr.rel (%p330) target = $region16
        $region15: #{tpu_custom_call.1} parent=11 // pred_region
          %s333 = smul.u32 2, %s37
          %p334 = scmp.lt.s32.totalorder %s333, 1
          %s335 = scalar_select %p334, %s333, 1
          %s336 = smul.addr %s335, 8
          %s337 = scalar_lea.vmem %s3, %s336
          %s338 = smul.u32 2, %s37
        $region16: #{tpu_custom_call.1} parent=11 // pred_fallthru
          _
        // Predicated region
        $region17: #{tpu_custom_call.1} parent=11 // pred_check
          %p339 = pneg %p140
        $region18: #{tpu_custom_call.1} parent=11 // pred_check_branch
          %341 = sbr.rel (%p339) target = $region20
        $region19: #{tpu_custom_call.1} parent=11 // pred_region
          _
        $region20: #{tpu_custom_call.1} parent=11 // pred_fallthru
          _
        // Predicated region
        $region21: #{tpu_custom_call.1} parent=11 // pred_check
          %p342 = pneg %p161
        $region22: #{tpu_custom_call.1} parent=11 // pred_check_branch
          %344 = sbr.rel (%p342) target = $region24
        $region23: #{tpu_custom_call.1} parent=11 // pred_region
          _
        $region24: #{tpu_custom_call.1} parent=11 // pred_fallthru
          _
        // Predicated region
        $region25: #{tpu_custom_call.1} parent=11 // pred_check
          %p345 = pneg %p182
        $region26: #{tpu_custom_call.1} parent=11 // pred_check_branch
          %347 = sbr.rel (%p345) target = $region28
        $region27: #{tpu_custom_call.1} parent=11 // pred_region
          _
        $region28: #{tpu_custom_call.1} parent=11 // pred_fallthru
          _
        // Predicated region
        $region29: #{tpu_custom_call.1} parent=11 // pred_check
          %p348 = pneg %p203
        $region30: #{tpu_custom_call.1} parent=11 // pred_check_branch
          %350 = sbr.rel (%p348) target = $region32
        $region31: #{tpu_custom_call.1} parent=11 // pred_region
          _
        $region32: #{tpu_custom_call.1} parent=11 // pred_fallthru
          _
        // Predicated region
        $region33: #{tpu_custom_call.1} parent=11 // pred_check
          %p351 = pneg %p224
        $region34: #{tpu_custom_call.1} parent=11 // pred_check_branch
          %353 = sbr.rel (%p351) target = $region36
        $region35: #{tpu_custom_call.1} parent=11 // pred_region
          _
        $region36: #{tpu_custom_call.1} parent=11 // pred_fallthru
          _
        // Predicated region
        $region37: #{tpu_custom_call.1} parent=11 // pred_check
          %p354 = pneg %p245
        $region38: #{tpu_custom_call.1} parent=11 // pred_check_branch
          %356 = sbr.rel (%p354) target = $region40
        $region39: #{tpu_custom_call.1} parent=11 // pred_region
          _
        $region40: #{tpu_custom_call.1} parent=11 // pred_fallthru
          _
        // Predicated region
        $region41: #{tpu_custom_call.1} parent=11 // pred_check
          %p357 = pneg %p266
        $region42: #{tpu_custom_call.1} parent=11 // pred_check_branch
          %359 = sbr.rel (%p357) target = $region44
        $region43: #{tpu_custom_call.1} parent=11 // pred_region
          _
        $region44: #{tpu_custom_call.1} parent=11 // pred_fallthru
          _
        // Predicated region
        $region45: #{tpu_custom_call.1} parent=11 // pred_check
          %p360 = pneg %p287
        $region46: #{tpu_custom_call.1} parent=11 // pred_check_branch
          %362 = sbr.rel (%p360) target = $region48
        $region47: #{tpu_custom_call.1} parent=11 // pred_region
          _
        $region48: #{tpu_custom_call.1} parent=11 // pred_fallthru
          _
      $region12: #{tpu_custom_call.1} parent=5 // pred_fallthru
        _
      %p363 = scmp.lt.s32.totalorder %s27, 2
      // Predicated region
      $region49: #{tpu_custom_call.1} parent=5 // pred_check
        %p364 = pneg %p363
      $region50: #{tpu_custom_call.1} parent=5 // pred_check_branch
        %366 = sbr.rel (%p364) target = $region52
      $region51: #{tpu_custom_call.1} parent=5 // pred_region
        // Predicated region
        $region53: #{tpu_custom_call.1} parent=51 // pred_check
          %p367 = pneg %p61
        $region54: #{tpu_custom_call.1} parent=51 // pred_check_branch
          %369 = sbr.rel (%p367) target = $region56
        $region55: #{tpu_custom_call.1} parent=51 // pred_region
          %s370 = smul.u32 2, %s35
          %p371 = scmp.lt.s32.totalorder %s34, 1
          %s372 = scalar_select %p371, %s34, 1
          %p373 = scmp.lt.s32.totalorder %s370, 1
          %s374 = scalar_select %p373, %s370, 1
          %s375 = smul.addr %s372, 2
          %s376 = sadd.s32 %s374, %s375
          %s377 = smul.addr %s376, 8
          %s378 = scalar_lea.vmem %s1, %s377
          %s379 = smul.u32 2, %s35
        $region56: #{tpu_custom_call.1} parent=51 // pred_fallthru
          _
        // Predicated region
        $region57: #{tpu_custom_call.1} parent=51 // pred_check
          %p380 = pneg %p87
        $region58: #{tpu_custom_call.1} parent=51 // pred_check_branch
          %382 = sbr.rel (%p380) target = $region60
        $region59: #{tpu_custom_call.1} parent=51 // pred_region
          %p383 = scmp.lt.s32.totalorder %s34, 1
          %s384 = scalar_select %p383, %s34, 1
          %s385 = smul.addr %s384, 16
          %s386 = smul.addr %s385, 8
          %s387 = scalar_lea.vmem %s2, %s386
        $region60: #{tpu_custom_call.1} parent=51 // pred_fallthru
          _
      $region52: #{tpu_custom_call.1} parent=5 // pred_fallthru
        _
      %p388 = scmp.le.s32.totalorder 1, %s27
      %p389 = scmp.lt.s32.totalorder %s27, 3
      %p390 = pnand %p388, %p389
      %p391 = pneg %p390
      // Predicated region
      $region61: #{tpu_custom_call.1} parent=5 // pred_check
        _
      $region62: #{tpu_custom_call.1} parent=5 // pred_check_branch
        %393 = sbr.rel (%p390) target = $region64
      $region63: #{tpu_custom_call.1} parent=5 // pred_region
        %s394 = ssub.s32 %s27, 1
        %s395 = smul.u32 2, %s37
        %p396 = scmp.lt.s32.totalorder %s36, 1
        %s397 = scalar_select %p396, %s36, 1
        %p398 = scmp.lt.s32.totalorder %s395, 1
        %s399 = scalar_select %p398, %s395, 1
        %s400 = smul.addr %s397, 2
        %s401 = sadd.s32 %s399, %s400
        %s402 = smul.addr %s401, 8
        %s403 = scalar_lea.vmem %s1, %s402
        %p404 = pneg %p67
        %p405 = pneg %p64
        %p406 = scmp.lt.s32.totalorder %s36, 1
        %s407 = scalar_select %p406, %s36, 1
        %s408 = smul.addr %s407, 16
        %s409 = smul.addr %s408, 8
        %s410 = scalar_lea.vmem %s2, %s409
        %p411 = pneg %p93
        %p412 = pneg %p90
        %s413 = smul.u32 2, %s37
        %p414 = scmp.lt.s32.totalorder %s413, 1
        %s415 = scalar_select %p414, %s413, 1
        %s416 = smul.addr %s415, 8
        %s417 = scalar_lea.vmem %s3, %s416
        %p418 = pneg %p119
        %p419 = pneg %p116
        %p420 = pneg %p140
        %p421 = pneg %p137
        %p422 = pneg %p161
        %p423 = pneg %p158
        %p424 = pneg %p182
        %p425 = pneg %p179
        %p426 = pneg %p203
        %p427 = pneg %p200
        %p428 = pneg %p224
        %p429 = pneg %p221
        %p430 = pneg %p245
        %p431 = pneg %p242
        %p432 = pneg %p266
        %p433 = pneg %p263
        %p434 = pneg %p287
        %p435 = pneg %p284
        %p436 = pneg %p315
        %p437 = pneg %p312
        %s438 = sand.u32 %s302, 1
        %s439 = scalar_lea.sflag [#allocation8], %s438
        %s440 = sand.u32 %s302, 1
        %s441 = smul.addr %s440, 16
        %s442 = scalar_lea.vmem [#allocation7], %s441
        %s443 = smul.u32 2, %s37
        %p444 = scmp.lt.s32.totalorder %s36, 1
        %s445 = scalar_select %p444, %s36, 1
        %p446 = scmp.lt.s32.totalorder %s443, 1
        %s447 = scalar_select %p446, %s443, 1
        %s448 = smul.addr %s445, 2
        %s449 = sadd.s32 %s447, %s448
        %s450 = smul.addr %s449, 8
        %s451 = scalar_lea.vmem %s1, %s450
        %s452 = smul.u32 2, %s37
        %p453 = scmp.lt.s32.totalorder %s36, 1
        %s454 = scalar_select %p453, %s36, 1
        %s455 = smul.addr %s454, 16
        %s456 = smul.addr %s455, 8
        %s457 = scalar_lea.vmem %s2, %s456
        %s458 = smul.u32 2, %s37
        %p459 = scmp.lt.s32.totalorder %s458, 1
        %s460 = scalar_select %p459, %s458, 1
        %s461 = smul.addr %s460, 8
        %s462 = scalar_lea.vmem %s3, %s461
        %s463 = smul.u32 2, %s37
        %s464 = smul.u32 2, %s37
        %p465 = scmp.eq.s32.totalorder %s37, 0
        // Predicated region
        $region65: #{tpu_custom_call.1} parent=63 // pred_check
          %p466 = pneg %p465
        $region66: #{tpu_custom_call.1} parent=63 // pred_check_branch
          %468 = sbr.rel (%p466) target = $region68
        $region67: #{tpu_custom_call.1} parent=63 // pred_region
          %v469 = vld [vmem:[%s457] sm:$0xff]
          %v470 = vld [vmem:[%s457 + $0x8] sm:$0xff]
          %v471 = vld [vmem:[%s457 + $0x10] sm:$0xff]
          %v472 = vld [vmem:[%s457 + $0x18] sm:$0xff]
          %v473 = vld [vmem:[%s457 + $0x20] sm:$0xff]
          %v474 = vld [vmem:[%s457 + $0x28] sm:$0xff]
          %v475 = vld [vmem:[%s457 + $0x30] sm:$0xff]
          %v476 = vld [vmem:[%s457 + $0x38] sm:$0xff]
          %v477 = vld [vmem:[%s457 + $0x40] sm:$0xff]
          %v478 = vld [vmem:[%s457 + $0x48] sm:$0xff]
          %v479 = vld [vmem:[%s457 + $0x50] sm:$0xff]
          %v480 = vld [vmem:[%s457 + $0x58] sm:$0xff]
          %v481 = vld [vmem:[%s457 + $0x60] sm:$0xff]
          %v482 = vld [vmem:[%s457 + $0x68] sm:$0xff]
          %v483 = vld [vmem:[%s457 + $0x70] sm:$0xff]
          %v484 = vld [vmem:[%s457 + $0x78] sm:$0xff]
          %v485 = vld [vmem:[%s6] sm:$0xff]
          %v486 = vld [vmem:[%s6 + $0x8] sm:$0xff]
          %v487 = vld [vmem:[%s6 + $0x10] sm:$0xff]
          %v488 = vld [vmem:[%s6 + $0x18] sm:$0xff]
          %v489 = vld [vmem:[%s7] sm:$0x1]
          %v491 = vlaneseq
          %v492 = vshrl.u32 %v491, 7
          %v493 = vsub.s32 0, %v492
          %v494 = vrot.slane %v489, %v493
          %vm496 = vcmask 261120
          %v498 = vsel %vm496, %v469, 0
          %v501 = vsel %vm496, %v470, 0
          %v504 = vsel %vm496, %v471, 0
          %v507 = vsel %vm496, %v472, 0
          %v510 = vsel %vm496, %v473, 0
          %v513 = vsel %vm496, %v474, 0
          %v516 = vsel %vm496, %v475, 0
          %v519 = vsel %vm496, %v476, 0
          %v522 = vsel %vm496, %v477, 0
          %v525 = vsel %vm496, %v478, 0
          %v528 = vsel %vm496, %v479, 0
          %v531 = vsel %vm496, %v480, 0
          %v534 = vsel %vm496, %v481, 0
          %v537 = vsel %vm496, %v482, 0
          %v540 = vsel %vm496, %v483, 0
          %v543 = vsel %vm496, %v484, 0
          %545 = vmatprep.subr.mxu0 0.0
          %546 = vmatpush1.msra.mxu0 %v485
          %547 = vmatprep.subr.mxu0 0.0
          %548 = vmatpush1.msra.mxu0 %v486
          %549 = vmatprep.subr.mxu0 0.0
          %550 = vmatpush1.msra.mxu0 %v487
          %551 = vmatprep.subr.mxu0 0.0
          %552 = vmatpush1.msra.mxu0 %v488
          %553 = vmatprep.subr.mxu0 0.0
          %554 = vmatpush1.msra.mxu0 0.0
          %555 = vmatprep.subr.mxu0 0.0
          %556 = vmatpush1.msra.mxu0 0.0
          %557 = vmatprep.subr.mxu0 0.0
          %558 = vmatpush1.msra.mxu0 0.0
          %559 = vmatprep.subr.mxu0 0.0
          %560 = vmatpush1.msra.mxu0 0.0
          %561 = vmatprep.subr.mxu0 0.0
          %562 = vmatpush1.msra.mxu0 0.0
          %563 = vmatprep.subr.mxu0 0.0
          %564 = vmatpush1.msra.mxu0 0.0
          %565 = vmatprep.subr.mxu0 0.0
          %566 = vmatpush1.msra.mxu0 0.0
          %567 = vmatprep.subr.mxu0 0.0
          %568 = vmatpush1.msra.mxu0 0.0
          %569 = vmatprep.subr.mxu0 0.0
          %570 = vmatpush1.msra.mxu0 0.0
          %571 = vmatprep.subr.mxu0 0.0
          %572 = vmatpush1.msra.mxu0 0.0
          %573 = vmatprep.subr.mxu0 0.0
          %574 = vmatpush1.msra.mxu0 0.0
          %575 = vmatprep.subr.mxu0 0.0
          %576 = vmatpush1.msra.mxu0 0.0
          %577 = vmatprep.subr.mxu0 0.0
          %578 = vmatpush1.msra.mxu0 0.0
          %579 = vmatprep.subr.mxu0 0.0
          %580 = vmatpush1.msra.mxu0 0.0
          %581 = vmatprep.subr.mxu0 0.0
          %582 = vmatpush1.msra.mxu0 0.0
          %583 = vmatprep.subr.mxu0 0.0
          %584 = vmatpush1.msra.mxu0 0.0
          %585 = vmatprep.subr.mxu0 0.0
          %586 = vmatpush1.msra.mxu0 0.0
          %587 = vmatprep.subr.mxu0 0.0
          %588 = vmatpush1.msra.mxu0 0.0
          %589 = vmatprep.subr.mxu0 0.0
          %590 = vmatpush1.msra.mxu0 0.0
          %591 = vmatprep.subr.mxu0 0.0
          %592 = vmatpush1.msra.mxu0 0.0
          %593 = vmatprep.subr.mxu0 0.0
          %594 = vmatpush1.msra.mxu0 0.0
          %595 = vmatprep.subr.mxu0 0.0
          %596 = vmatpush1.msra.mxu0 0.0
          %597 = vmatprep.subr.mxu0 0.0
          %598 = vmatpush1.msra.mxu0 0.0
          %599 = vmatprep.subr.mxu0 0.0
          %600 = vmatpush1.msra.mxu0 0.0
          %601 = vmatprep.subr.mxu0 0.0
          %602 = vmatpush1.msra.mxu0 0.0
          %603 = vmatprep.subr.mxu0 0.0
          %604 = vmatpush1.msra.mxu0 0.0
          %605 = vmatprep.subr.mxu0 0.0
          %606 = vmatpush1.msra.mxu0 0.0
          %607 = vmatprep.subr.mxu0 0.0
          %608 = vmatpush1.msra.mxu0 0.0
          %609 = vmatprep.mubr.f32.mxu0 0.0
          %610 = vmatmul.mubr.f32.gmra.mrb[0].mxu0 %v498
          %v611 = vpop.f32.mrb[0].mxu0
          %v612 = vadd.f32 %v494, %v611
          %v613 = vpop.f32.mrb[0].mxu0
          %614 = vmatprep.mubr.f32.mxu0 0.0
          %615 = vmatmul.mubr.f32.gmra.mrb[0].mxu0 %v501
          %v616 = vpop.f32.mrb[0].mxu0
          %v617 = vadd.f32 %v494, %v616
          %v618 = vpop.f32.mrb[0].mxu0
          %619 = vmatprep.mubr.f32.mxu0 0.0
          %620 = vmatmul.mubr.f32.gmra.mrb[0].mxu0 %v504
          %v621 = vpop.f32.mrb[0].mxu0
          %v622 = vadd.f32 %v494, %v621
          %v623 = vpop.f32.mrb[0].mxu0
          %624 = vmatprep.mubr.f32.mxu0 0.0
          %625 = vmatmul.mubr.f32.gmra.mrb[0].mxu0 %v507
          %v626 = vpop.f32.mrb[0].mxu0
          %v627 = vadd.f32 %v494, %v626
          %v628 = vpop.f32.mrb[0].mxu0
          %629 = vmatprep.mubr.f32.mxu0 0.0
          %630 = vmatmul.mubr.f32.gmra.mrb[0].mxu0 %v510
          %v631 = vpop.f32.mrb[0].mxu0
          %v632 = vadd.f32 %v494, %v631
          %v633 = vpop.f32.mrb[0].mxu0
          %634 = vmatprep.mubr.f32.mxu0 0.0
          %635 = vmatmul.mubr.f32.gmra.mrb[0].mxu0 %v513
          %v636 = vpop.f32.mrb[0].mxu0
          %v637 = vadd.f32 %v494, %v636
          %v638 = vpop.f32.mrb[0].mxu0
          %639 = vmatprep.mubr.f32.mxu0 0.0
          %640 = vmatmul.mubr.f32.gmra.mrb[0].mxu0 %v516
          %v641 = vpop.f32.mrb[0].mxu0
          %v642 = vadd.f32 %v494, %v641
          %v643 = vpop.f32.mrb[0].mxu0
          %644 = vmatprep.mubr.f32.mxu0 0.0
          %645 = vmatmul.mubr.f32.gmra.mrb[0].mxu0 %v519
          %v646 = vpop.f32.mrb[0].mxu0
          %v647 = vadd.f32 %v494, %v646
          %v648 = vpop.f32.mrb[0].mxu0
          %649 = vmatprep.mubr.f32.mxu0 0.0
          %650 = vmatmul.mubr.f32.gmra.mrb[0].mxu0 %v522
          %v651 = vpop.f32.mrb[0].mxu0
          %v652 = vadd.f32 %v494, %v651
          %v653 = vpop.f32.mrb[0].mxu0
          %654 = vmatprep.mubr.f32.mxu0 0.0
          %655 = vmatmul.mubr.f32.gmra.mrb[0].mxu0 %v525
          %v656 = vpop.f32.mrb[0].mxu0
          %v657 = vadd.f32 %v494, %v656
          %v658 = vpop.f32.mrb[0].mxu0
          %659 = vmatprep.mubr.f32.mxu0 0.0
          %660 = vmatmul.mubr.f32.gmra.mrb[0].mxu0 %v528
          %v661 = vpop.f32.mrb[0].mxu0
          %v662 = vadd.f32 %v494, %v661
          %v663 = vpop.f32.mrb[0].mxu0
          %664 = vmatprep.mubr.f32.mxu0 0.0
          %665 = vmatmul.mubr.f32.gmra.mrb[0].mxu0 %v531
          %v666 = vpop.f32.mrb[0].mxu0
          %v667 = vadd.f32 %v494, %v666
          %v668 = vpop.f32.mrb[0].mxu0
          %669 = vmatprep.mubr.f32.mxu0 0.0
          %670 = vmatmul.mubr.f32.gmra.mrb[0].mxu0 %v534
          %v671 = vpop.f32.mrb[0].mxu0
          %v672 = vadd.f32 %v494, %v671
          %v673 = vpop.f32.mrb[0].mxu0
          %674 = vmatprep.mubr.f32.mxu0 0.0
          %675 = vmatmul.mubr.f32.gmra.mrb[0].mxu0 %v537
          %v676 = vpop.f32.mrb[0].mxu0
          %v677 = vadd.f32 %v494, %v676
          %v678 = vpop.f32.mrb[0].mxu0
          %679 = vmatprep.mubr.f32.mxu0 0.0
          %680 = vmatmul.mubr.f32.gmra.mrb[0].mxu0 %v540
          %v681 = vpop.f32.mrb[0].mxu0
          %v682 = vadd.f32 %v494, %v681
          %v683 = vpop.f32.mrb[0].mxu0
          %684 = vmatprep.mubr.f32.mxu0 0.0
          %685 = vmatmul.mubr.f32.gmra.mrb[0].mxu0 %v543
          %v686 = vpop.f32.mrb[0].mxu0
          %v687 = vadd.f32 %v494, %v686
          %v688 = vpop.f32.mrb[0].mxu0
          %689 = vdwg.mxu0
          %690 = vst.msk [vmem:[#allocation2] sm:$0xff] %vm496, %v612
          %691 = vst.msk [vmem:[#allocation2 + $0x8] sm:$0xff] %vm496, %v617
          %692 = vst.msk [vmem:[#allocation2 + $0x10] sm:$0xff] %vm496, %v622
          %693 = vst.msk [vmem:[#allocation2 + $0x18] sm:$0xff] %vm496, %v627
          %694 = vst.msk [vmem:[#allocation2 + $0x20] sm:$0xff] %vm496, %v632
          %695 = vst.msk [vmem:[#allocation2 + $0x28] sm:$0xff] %vm496, %v637
          %696 = vst.msk [vmem:[#allocation2 + $0x30] sm:$0xff] %vm496, %v642
          %697 = vst.msk [vmem:[#allocation2 + $0x38] sm:$0xff] %vm496, %v647
          %698 = vst.msk [vmem:[#allocation2 + $0x40] sm:$0xff] %vm496, %v652
          %699 = vst.msk [vmem:[#allocation2 + $0x48] sm:$0xff] %vm496, %v657
          %700 = vst.msk [vmem:[#allocation2 + $0x50] sm:$0xff] %vm496, %v662
          %701 = vst.msk [vmem:[#allocation2 + $0x58] sm:$0xff] %vm496, %v667
          %702 = vst.msk [vmem:[#allocation2 + $0x60] sm:$0xff] %vm496, %v672
          %703 = vst.msk [vmem:[#allocation2 + $0x68] sm:$0xff] %vm496, %v677
          %704 = vst.msk [vmem:[#allocation2 + $0x70] sm:$0xff] %vm496, %v682
          %705 = vst.msk [vmem:[#allocation2 + $0x78] sm:$0xff] %vm496, %v687
          %v706 = vld [vmem:[%s8] sm:$0xff]
          %v707 = vld [vmem:[%s8 + $0x8] sm:$0xff]
          %v708 = vld [vmem:[%s8 + $0x10] sm:$0xff]
          %v709 = vld [vmem:[%s8 + $0x18] sm:$0xff]
          %v710 = vld [vmem:[%s9] sm:$0x1]
          %v712 = vlaneseq
          %v713 = vshrl.u32 %v712, 7
          %v714 = vsub.s32 0, %v713
          %v715 = vrot.slane %v710, %v714
          %717 = vmatprep.subr.mxu0 0.0
          %718 = vmatpush1.msra.mxu0 %v706
          %719 = vmatprep.subr.mxu0 0.0
          %720 = vmatpush1.msra.mxu0 %v707
          %721 = vmatprep.subr.mxu0 0.0
          %722 = vmatpush1.msra.mxu0 %v708
          %723 = vmatprep.subr.mxu0 0.0
          %724 = vmatpush1.msra.mxu0 %v709
          %725 = vmatprep.subr.mxu0 0.0
          %726 = vmatpush1.msra.mxu0 0.0
          %727 = vmatprep.subr.mxu0 0.0
          %728 = vmatpush1.msra.mxu0 0.0
          %729 = vmatprep.subr.mxu0 0.0
          %730 = vmatpush1.msra.mxu0 0.0
          %731 = vmatprep.subr.mxu0 0.0
          %732 = vmatpush1.msra.mxu0 0.0
          %733 = vmatprep.subr.mxu0 0.0
          %734 = vmatpush1.msra.mxu0 0.0
          %735 = vmatprep.subr.mxu0 0.0
          %736 = vmatpush1.msra.mxu0 0.0
          %737 = vmatprep.subr.mxu0 0.0
          %738 = vmatpush1.msra.mxu0 0.0
          %739 = vmatprep.subr.mxu0 0.0
          %740 = vmatpush1.msra.mxu0 0.0
          %741 = vmatprep.subr.mxu0 0.0
          %742 = vmatpush1.msra.mxu0 0.0
          %743 = vmatprep.subr.mxu0 0.0
          %744 = vmatpush1.msra.mxu0 0.0
          %745 = vmatprep.subr.mxu0 0.0
          %746 = vmatpush1.msra.mxu0 0.0
          %747 = vmatprep.subr.mxu0 0.0
          %748 = vmatpush1.msra.mxu0 0.0
          %749 = vmatprep.subr.mxu0 0.0
          %750 = vmatpush1.msra.mxu0 0.0
          %751 = vmatprep.subr.mxu0 0.0
          %752 = vmatpush1.msra.mxu0 0.0
          %753 = vmatprep.subr.mxu0 0.0
          %754 = vmatpush1.msra.mxu0 0.0
          %755 = vmatprep.subr.mxu0 0.0
          %756 = vmatpush1.msra.mxu0 0.0
          %757 = vmatprep.subr.mxu0 0.0
          %758 = vmatpush1.msra.mxu0 0.0
          %759 = vmatprep.subr.mxu0 0.0
          %760 = vmatpush1.msra.mxu0 0.0
          %761 = vmatprep.subr.mxu0 0.0
          %762 = vmatpush1.msra.mxu0 0.0
          %763 = vmatprep.subr.mxu0 0.0
          %764 = vmatpush1.msra.mxu0 0.0
          %765 = vmatprep.subr.mxu0 0.0
          %766 = vmatpush1.msra.mxu0 0.0
          %767 = vmatprep.subr.mxu0 0.0
          %768 = vmatpush1.msra.mxu0 0.0
          %769 = vmatprep.subr.mxu0 0.0
          %770 = vmatpush1.msra.mxu0 0.0
          %771 = vmatprep.subr.mxu0 0.0
          %772 = vmatpush1.msra.mxu0 0.0
          %773 = vmatprep.subr.mxu0 0.0
          %774 = vmatpush1.msra.mxu0 0.0
          %775 = vmatprep.subr.mxu0 0.0
          %776 = vmatpush1.msra.mxu0 0.0
          %777 = vmatprep.subr.mxu0 0.0
          %778 = vmatpush1.msra.mxu0 0.0
          %779 = vmatprep.subr.mxu0 0.0
          %780 = vmatpush1.msra.mxu0 0.0
          %781 = vmatprep.mubr.f32.mxu0 0.0
          %782 = vmatmul.mubr.f32.gmra.mrb[0].mxu0 %v498
          %v783 = vpop.f32.mrb[0].mxu0
          %v784 = vadd.f32 %v715, %v783
          %v785 = vpop.f32.mrb[0].mxu0
          %786 = vmatprep.mubr.f32.mxu0 0.0
          %787 = vmatmul.mubr.f32.gmra.mrb[0].mxu0 %v501
          %v788 = vpop.f32.mrb[0].mxu0
          %v789 = vadd.f32 %v715, %v788
          %v790 = vpop.f32.mrb[0].mxu0
          %791 = vmatprep.mubr.f32.mxu0 0.0
          %792 = vmatmul.mubr.f32.gmra.mrb[0].mxu0 %v504
          %v793 = vpop.f32.mrb[0].mxu0
          %v794 = vadd.f32 %v715, %v793
          %v795 = vpop.f32.mrb[0].mxu0
          %796 = vmatprep.mubr.f32.mxu0 0.0
          %797 = vmatmul.mubr.f32.gmra.mrb[0].mxu0 %v507
          %v798 = vpop.f32.mrb[0].mxu0
          %v799 = vadd.f32 %v715, %v798
          %v800 = vpop.f32.mrb[0].mxu0
          %801 = vmatprep.mubr.f32.mxu0 0.0
          %802 = vmatmul.mubr.f32.gmra.mrb[0].mxu0 %v510
          %v803 = vpop.f32.mrb[0].mxu0
          %v804 = vadd.f32 %v715, %v803
          %v805 = vpop.f32.mrb[0].mxu0
          %806 = vmatprep.mubr.f32.mxu0 0.0
          %807 = vmatmul.mubr.f32.gmra.mrb[0].mxu0 %v513
          %v808 = vpop.f32.mrb[0].mxu0
          %v809 = vadd.f32 %v715, %v808
          %v810 = vpop.f32.mrb[0].mxu0
          %811 = vmatprep.mubr.f32.mxu0 0.0
          %812 = vmatmul.mubr.f32.gmra.mrb[0].mxu0 %v516
          %v813 = vpop.f32.mrb[0].mxu0
          %v814 = vadd.f32 %v715, %v813
          %v815 = vpop.f32.mrb[0].mxu0
          %816 = vmatprep.mubr.f32.mxu0 0.0
          %817 = vmatmul.mubr.f32.gmra.mrb[0].mxu0 %v519
          %v818 = vpop.f32.mrb[0].mxu0
          %v819 = vadd.f32 %v715, %v818
          %v820 = vpop.f32.mrb[0].mxu0
          %821 = vmatprep.mubr.f32.mxu0 0.0
          %822 = vmatmul.mubr.f32.gmra.mrb[0].mxu0 %v522
          %v823 = vpop.f32.mrb[0].mxu0
          %v824 = vadd.f32 %v715, %v823
          %v825 = vpop.f32.mrb[0].mxu0
          %826 = vmatprep.mubr.f32.mxu0 0.0
          %827 = vmatmul.mubr.f32.gmra.mrb[0].mxu0 %v525
          %v828 = vpop.f32.mrb[0].mxu0
          %v829 = vadd.f32 %v715, %v828
          %v830 = vpop.f32.mrb[0].mxu0
          %831 = vmatprep.mubr.f32.mxu0 0.0
          %832 = vmatmul.mubr.f32.gmra.mrb[0].mxu0 %v528
          %v833 = vpop.f32.mrb[0].mxu0
          %v834 = vadd.f32 %v715, %v833
          %v835 = vpop.f32.mrb[0].mxu0
          %836 = vmatprep.mubr.f32.mxu0 0.0
          %837 = vmatmul.mubr.f32.gmra.mrb[0].mxu0 %v531
          %v838 = vpop.f32.mrb[0].mxu0
          %v839 = vadd.f32 %v715, %v838
          %v840 = vpop.f32.mrb[0].mxu0
          %841 = vmatprep.mubr.f32.mxu0 0.0
          %842 = vmatmul.mubr.f32.gmra.mrb[0].mxu0 %v534
          %v843 = vpop.f32.mrb[0].mxu0
          %v844 = vadd.f32 %v715, %v843
          %v845 = vpop.f32.mrb[0].mxu0
          %846 = vmatprep.mubr.f32.mxu0 0.0
          %847 = vmatmul.mubr.f32.gmra.mrb[0].mxu0 %v537
          %v848 = vpop.f32.mrb[0].mxu0
          %v849 = vadd.f32 %v715, %v848
          %v850 = vpop.f32.mrb[0].mxu0
          %851 = vmatprep.mubr.f32.mxu0 0.0
          %852 = vmatmul.mubr.f32.gmra.mrb[0].mxu0 %v540
          %v853 = vpop.f32.mrb[0].mxu0
          %v854 = vadd.f32 %v715, %v853
          %v855 = vpop.f32.mrb[0].mxu0
          %856 = vmatprep.mubr.f32.mxu0 0.0
          %857 = vmatmul.mubr.f32.gmra.mrb[0].mxu0 %v543
          %v858 = vpop.f32.mrb[0].mxu0
          %v859 = vadd.f32 %v715, %v858
          %v860 = vpop.f32.mrb[0].mxu0
          %861 = vdwg.mxu0
          %862 = vst.msk [vmem:[#allocation3] sm:$0xff] %vm496, %v784
          %863 = vst.msk [vmem:[#allocation3 + $0x8] sm:$0xff] %vm496, %v789
          %864 = vst.msk [vmem:[#allocation3 + $0x10] sm:$0xff] %vm496, %v794
          %865 = vst.msk [vmem:[#allocation3 + $0x18] sm:$0xff] %vm496, %v799
          %866 = vst.msk [vmem:[#allocation3 + $0x20] sm:$0xff] %vm496, %v804
          %867 = vst.msk [vmem:[#allocation3 + $0x28] sm:$0xff] %vm496, %v809
          %868 = vst.msk [vmem:[#allocation3 + $0x30] sm:$0xff] %vm496, %v814
          %869 = vst.msk [vmem:[#allocation3 + $0x38] sm:$0xff] %vm496, %v819
          %870 = vst.msk [vmem:[#allocation3 + $0x40] sm:$0xff] %vm496, %v824
          %871 = vst.msk [vmem:[#allocation3 + $0x48] sm:$0xff] %vm496, %v829
          %872 = vst.msk [vmem:[#allocation3 + $0x50] sm:$0xff] %vm496, %v834
          %873 = vst.msk [vmem:[#allocation3 + $0x58] sm:$0xff] %vm496, %v839
          %874 = vst.msk [vmem:[#allocation3 + $0x60] sm:$0xff] %vm496, %v844
          %875 = vst.msk [vmem:[#allocation3 + $0x68] sm:$0xff] %vm496, %v849
          %876 = vst.msk [vmem:[#allocation3 + $0x70] sm:$0xff] %vm496, %v854
          %877 = vst.msk [vmem:[#allocation3 + $0x78] sm:$0xff] %vm496, %v859
        $region68: #{tpu_custom_call.1} parent=63 // pred_fallthru
          _
        %v878 = vld [vmem:[%s451] sm:$0xff]
        %v879 = vld [vmem:[%s451 + $0x8] sm:$0xff]
        %v880 = vld [vmem:[%s4] sm:$0xff]
        %v881 = vld [vmem:[%s4 + $0x8] sm:$0xff]
        %v882 = vld [vmem:[%s4 + $0x10] sm:$0xff]
        %v883 = vld [vmem:[%s4 + $0x18] sm:$0xff]
        %v884 = vld [vmem:[%s5] sm:$0x1]
        %v886 = vlaneseq
        %v887 = vshrl.u32 %v886, 7
        %v888 = vsub.s32 0, %v887
        %v889 = vrot.slane %v884, %v888
        %vm891 = vcmask 261120
        %v893 = vsel %vm891, %v878, 0
        %v896 = vsel %vm891, %v879, 0
        %898 = vmatprep.subr.mxu0 0.0
        %899 = vmatpush1.msra.mxu0 %v880
        %900 = vmatprep.subr.mxu0 0.0
        %901 = vmatpush1.msra.mxu0 %v881
        %902 = vmatprep.subr.mxu0 0.0
        %903 = vmatpush1.msra.mxu0 %v882
        %904 = vmatprep.subr.mxu0 0.0
        %905 = vmatpush1.msra.mxu0 %v883
        %906 = vmatprep.subr.mxu0 0.0
        %907 = vmatpush1.msra.mxu0 0.0
        %908 = vmatprep.subr.mxu0 0.0
        %909 = vmatpush1.msra.mxu0 0.0
        %910 = vmatprep.subr.mxu0 0.0
        %911 = vmatpush1.msra.mxu0 0.0
        %912 = vmatprep.subr.mxu0 0.0
        %913 = vmatpush1.msra.mxu0 0.0
        %914 = vmatprep.subr.mxu0 0.0
        %915 = vmatpush1.msra.mxu0 0.0
        %916 = vmatprep.subr.mxu0 0.0
        %917 = vmatpush1.msra.mxu0 0.0
        %918 = vmatprep.subr.mxu0 0.0
        %919 = vmatpush1.msra.mxu0 0.0
        %920 = vmatprep.subr.mxu0 0.0
        %921 = vmatpush1.msra.mxu0 0.0
        %922 = vmatprep.subr.mxu0 0.0
        %923 = vmatpush1.msra.mxu0 0.0
        %924 = vmatprep.subr.mxu0 0.0
        %925 = vmatpush1.msra.mxu0 0.0
        %926 = vmatprep.subr.mxu0 0.0
        %927 = vmatpush1.msra.mxu0 0.0
        %928 = vmatprep.subr.mxu0 0.0
        %929 = vmatpush1.msra.mxu0 0.0
        %930 = vmatprep.subr.mxu0 0.0
        %931 = vmatpush1.msra.mxu0 0.0
        %932 = vmatprep.subr.mxu0 0.0
        %933 = vmatpush1.msra.mxu0 0.0
        %934 = vmatprep.subr.mxu0 0.0
        %935 = vmatpush1.msra.mxu0 0.0
        %936 = vmatprep.subr.mxu0 0.0
        %937 = vmatpush1.msra.mxu0 0.0
        %938 = vmatprep.subr.mxu0 0.0
        %939 = vmatpush1.msra.mxu0 0.0
        %940 = vmatprep.subr.mxu0 0.0
        %941 = vmatpush1.msra.mxu0 0.0
        %942 = vmatprep.subr.mxu0 0.0
        %943 = vmatpush1.msra.mxu0 0.0
        %944 = vmatprep.subr.mxu0 0.0
        %945 = vmatpush1.msra.mxu0 0.0
        %946 = vmatprep.subr.mxu0 0.0
        %947 = vmatpush1.msra.mxu0 0.0
        %948 = vmatprep.subr.mxu0 0.0
        %949 = vmatpush1.msra.mxu0 0.0
        %950 = vmatprep.subr.mxu0 0.0
        %951 = vmatpush1.msra.mxu0 0.0
        %952 = vmatprep.subr.mxu0 0.0
        %953 = vmatpush1.msra.mxu0 0.0
        %954 = vmatprep.subr.mxu0 0.0
        %955 = vmatpush1.msra.mxu0 0.0
        %956 = vmatprep.subr.mxu0 0.0
        %957 = vmatpush1.msra.mxu0 0.0
        %958 = vmatprep.subr.mxu0 0.0
        %959 = vmatpush1.msra.mxu0 0.0
        %960 = vmatprep.subr.mxu0 0.0
        %961 = vmatpush1.msra.mxu0 0.0
        %962 = vmatprep.mubr.f32.mxu0 0.0
        %963 = vmatmul.mubr.f32.gmra.mrb[0].mxu0 %v893
        %v964 = vpop.f32.mrb[0].mxu0
        %v965 = vadd.f32 %v889, %v964
        %v966 = vpop.f32.mrb[0].mxu0
        %967 = vmatprep.mubr.f32.mxu0 0.0
        %968 = vmatmul.mubr.f32.gmra.mrb[0].mxu0 %v896
        %v969 = vpop.f32.mrb[0].mxu0
        %v970 = vadd.f32 %v889, %v969
        %v971 = vpop.f32.mrb[0].mxu0
        %972 = vdwg.mxu0
        %v973 = vld [vmem:[%s462] sm:$0xff]
        %v974 = vld [vmem:[%s462 + $0x8] sm:$0xff]
        %s975 = sld [smem:[#allocation6 + %s36]]
        %v976 = vlaneseq
        %v977 = vand.u32 %v976, 127
        %v978 = vstv %s975
        %vm979 = vcmp.ge.s32.totalorder %v977, %v978
        %v980 = vld [vmem:[#allocation2] sm:$0xff]
        %v981 = vld [vmem:[#allocation2 + $0x8] sm:$0xff]
        %v982 = vld [vmem:[#allocation2 + $0x10] sm:$0xff]
        %v983 = vld [vmem:[#allocation2 + $0x18] sm:$0xff]
        %v984 = vld [vmem:[#allocation2 + $0x20] sm:$0xff]
        %v985 = vld [vmem:[#allocation2 + $0x28] sm:$0xff]
        %v986 = vld [vmem:[#allocation2 + $0x30] sm:$0xff]
        %v987 = vld [vmem:[#allocation2 + $0x38] sm:$0xff]
        %v988 = vld [vmem:[#allocation2 + $0x40] sm:$0xff]
        %v989 = vld [vmem:[#allocation2 + $0x48] sm:$0xff]
        %v990 = vld [vmem:[#allocation2 + $0x50] sm:$0xff]
        %v991 = vld [vmem:[#allocation2 + $0x58] sm:$0xff]
        %v992 = vld [vmem:[#allocation2 + $0x60] sm:$0xff]
        %v993 = vld [vmem:[#allocation2 + $0x68] sm:$0xff]
        %v994 = vld [vmem:[#allocation2 + $0x70] sm:$0xff]
        %v995 = vld [vmem:[#allocation2 + $0x78] sm:$0xff]
        %v996 = vld [vmem:[#allocation3] sm:$0xff]
        %v997 = vld [vmem:[#allocation3 + $0x8] sm:$0xff]
        %v998 = vld [vmem:[#allocation3 + $0x10] sm:$0xff]
        %v999 = vld [vmem:[#allocation3 + $0x18] sm:$0xff]
        %v1000 = vld [vmem:[#allocation3 + $0x20] sm:$0xff]
        %v1001 = vld [vmem:[#allocation3 + $0x28] sm:$0xff]
        %v1002 = vld [vmem:[#allocation3 + $0x30] sm:$0xff]
        %v1003 = vld [vmem:[#allocation3 + $0x38] sm:$0xff]
        %v1004 = vld [vmem:[#allocation3 + $0x40] sm:$0xff]
        %v1005 = vld [vmem:[#allocation3 + $0x48] sm:$0xff]
        %v1006 = vld [vmem:[#allocation3 + $0x50] sm:$0xff]
        %v1007 = vld [vmem:[#allocation3 + $0x58] sm:$0xff]
        %v1008 = vld [vmem:[#allocation3 + $0x60] sm:$0xff]
        %v1009 = vld [vmem:[#allocation3 + $0x68] sm:$0xff]
        %v1010 = vld [vmem:[#allocation3 + $0x70] sm:$0xff]
        %v1011 = vld [vmem:[#allocation3 + $0x78] sm:$0xff]
        %vm1012 = vcmask 64512
        %v1014 = vsel %vm1012, %v965, 0
        %v1017 = vsel %vm1012, %v970, 0
        %v1020 = vsel %vm1012, %v980, 0
        %v1023 = vsel %vm1012, %v981, 0
        %v1026 = vsel %vm1012, %v982, 0
        %v1029 = vsel %vm1012, %v983, 0
        %v1032 = vsel %vm1012, %v984, 0
        %v1035 = vsel %vm1012, %v985, 0
        %v1038 = vsel %vm1012, %v986, 0
        %v1041 = vsel %vm1012, %v987, 0
        %v1044 = vsel %vm1012, %v988, 0
        %v1047 = vsel %vm1012, %v989, 0
        %v1050 = vsel %vm1012, %v990, 0
        %v1053 = vsel %vm1012, %v991, 0
        %v1056 = vsel %vm1012, %v992, 0
        %v1059 = vsel %vm1012, %v993, 0
        %v1062 = vsel %vm1012, %v994, 0
        %v1065 = vsel %vm1012, %v995, 0
        %1067 = vmatprep.subr.mxu0 0.0
        %1068 = vmatpush1.xpose.msra.mxu0 %v1020
        %1069 = vmatprep.subr.mxu0 0.0
        %1070 = vmatpush1.xpose.msra.mxu0 %v1023
        %1071 = vmatprep.subr.mxu0 0.0
        %1072 = vmatpush1.xpose.msra.mxu0 %v1026
        %1073 = vmatprep.subr.mxu0 0.0
        %1074 = vmatpush1.xpose.msra.mxu0 %v1029
        %1075 = vmatprep.subr.mxu0 0.0
        %1076 = vmatpush1.xpose.msra.mxu0 %v1032
        %1077 = vmatprep.subr.mxu0 0.0
        %1078 = vmatpush1.xpose.msra.mxu0 %v1035
        %1079 = vmatprep.subr.mxu0 0.0
        %1080 = vmatpush1.xpose.msra.mxu0 %v1038
        %1081 = vmatprep.subr.mxu0 0.0
        %1082 = vmatpush1.xpose.msra.mxu0 %v1041
        %1083 = vmatprep.subr.mxu0 0.0
        %1084 = vmatpush1.xpose.msra.mxu0 %v1044
        %1085 = vmatprep.subr.mxu0 0.0
        %1086 = vmatpush1.xpose.msra.mxu0 %v1047
        %1087 = vmatprep.subr.mxu0 0.0
        %1088 = vmatpush1.xpose.msra.mxu0 %v1050
        %1089 = vmatprep.subr.mxu0 0.0
        %1090 = vmatpush1.xpose.msra.mxu0 %v1053
        %1091 = vmatprep.subr.mxu0 0.0
        %1092 = vmatpush1.xpose.msra.mxu0 %v1056
        %1093 = vmatprep.subr.mxu0 0.0
        %1094 = vmatpush1.xpose.msra.mxu0 %v1059
        %1095 = vmatprep.subr.mxu0 0.0
        %1096 = vmatpush1.xpose.msra.mxu0 %v1062
        %1097 = vmatprep.subr.mxu0 0.0
        %1098 = vmatpush1.xpose.msra.mxu0 %v1065
        %1099 = vmatprep.subr.mxu0 0.0
        %1100 = vmatpush1.xpose.msra.mxu0 0.0
        %1101 = vmatprep.subr.mxu0 0.0
        %1102 = vmatpush1.xpose.msra.mxu0 0.0
        %1103 = vmatprep.subr.mxu0 0.0
        %1104 = vmatpush1.xpose.msra.mxu0 0.0
        %1105 = vmatprep.subr.mxu0 0.0
        %1106 = vmatpush1.xpose.msra.mxu0 0.0
        %1107 = vmatprep.subr.mxu0 0.0
        %1108 = vmatpush1.xpose.msra.mxu0 0.0
        %1109 = vmatprep.subr.mxu0 0.0
        %1110 = vmatpush1.xpose.msra.mxu0 0.0
        %1111 = vmatprep.subr.mxu0 0.0
        %1112 = vmatpush1.xpose.msra.mxu0 0.0
        %1113 = vmatprep.subr.mxu0 0.0
        %1114 = vmatpush1.xpose.msra.mxu0 0.0
        %1115 = vmatprep.subr.mxu0 0.0
        %1116 = vmatpush1.xpose.msra.mxu0 0.0
        %1117 = vmatprep.subr.mxu0 0.0
        %1118 = vmatpush1.xpose.msra.mxu0 0.0
        %1119 = vmatprep.subr.mxu0 0.0
        %1120 = vmatpush1.xpose.msra.mxu0 0.0
        %1121 = vmatprep.subr.mxu0 0.0
        %1122 = vmatpush1.xpose.msra.mxu0 0.0
        %1123 = vmatprep.subr.mxu0 0.0
        %1124 = vmatpush1.xpose.msra.mxu0 0.0
        %1125 = vmatprep.subr.mxu0 0.0
        %1126 = vmatpush1.xpose.msra.mxu0 0.0
        %1127 = vmatprep.subr.mxu0 0.0
        %1128 = vmatpush1.xpose.msra.mxu0 0.0
        %1129 = vmatprep.subr.mxu0 0.0
        %1130 = vmatpush1.xpose.msra.mxu0 0.0
        %1131 = vmatprep.mubr.f32.mxu0 0.0
        %1132 = vmatmul.mubr.f32.gmra.mrb[0].mxu0 %v1014
        %v1133 = vpop.f32.mrb[0].mxu0
        %v1134 = vadd.f32 %v973, %v1133
        %v1135 = vpop.f32.mrb[0].mxu0
        %1136 = vmatprep.mubr.f32.mxu0 0.0
        %1137 = vmatmul.mubr.f32.gmra.mrb[0].mxu0 %v1017
        %v1138 = vpop.f32.mrb[0].mxu0
        %v1139 = vadd.f32 %v974, %v1138
        %v1140 = vpop.f32.mrb[0].mxu0
        %1141 = vdwg.mxu0
        %v1142 = vsel %vm979, 1, 0
        %vm1143 = vcmp.eq.s32.totalorder %v1142, 1
        %v1144 = vsel %vm1143, -1e+08, %v1134
        %v1145 = vsel %vm1143, -1e+08, %v1139
        %1146 = vmax.xlane.f32.xlu0 %v1144
        %v1147 = vpop.xlane.xlu0 %1146
        %1148 = vmax.xlane.f32.xlu0 %v1145
        %v1149 = vpop.xlane.xlu0 %1148
        %v1150 = vsub.f32 %v1144, %v1147
        %v1151 = vsub.f32 %v1145, %v1149
        %v1152 = vmul.f32 %v1150, 1.442695
        %v1153 = vpow.pop %v1152
        %v1154 = vmul.f32 %v1151, 1.442695
        %v1155 = vpow.pop %v1154
        %1156 = vadd.xlane.f32.xlu0 %v1153
        %v1157 = vpop.xlane.xlu0 %1156
        %1158 = vadd.xlane.f32.xlu0 %v1155
        %v1159 = vpop.xlane.xlu0 %1158
        %v1160 = vrcp.pop %v1157
        %v1161 = vrcp.pop %v1159
        %v1162 = vmul.f32 %v1153, %v1160
        %v1163 = vmul.f32 %v1155, %v1161
        %1164 = vmatprep.subr.mxu0 0.0
        %1165 = vmatpush1.msra.mxu0 %v996
        %1166 = vmatprep.subr.mxu0 0.0
        %1167 = vmatpush1.msra.mxu0 %v997
        %1168 = vmatprep.subr.mxu0 0.0
        %1169 = vmatpush1.msra.mxu0 %v998
        %1170 = vmatprep.subr.mxu0 0.0
        %1171 = vmatpush1.msra.mxu0 %v999
        %1172 = vmatprep.subr.mxu0 0.0
        %1173 = vmatpush1.msra.mxu0 %v1000
        %1174 = vmatprep.subr.mxu0 0.0
        %1175 = vmatpush1.msra.mxu0 %v1001
        %1176 = vmatprep.subr.mxu0 0.0
        %1177 = vmatpush1.msra.mxu0 %v1002
        %1178 = vmatprep.subr.mxu0 0.0
        %1179 = vmatpush1.msra.mxu0 %v1003
        %1180 = vmatprep.subr.mxu0 0.0
        %1181 = vmatpush1.msra.mxu0 %v1004
        %1182 = vmatprep.subr.mxu0 0.0
        %1183 = vmatpush1.msra.mxu0 %v1005
        %1184 = vmatprep.subr.mxu0 0.0
        %1185 = vmatpush1.msra.mxu0 %v1006
        %1186 = vmatprep.subr.mxu0 0.0
        %1187 = vmatpush1.msra.mxu0 %v1007
        %1188 = vmatprep.subr.mxu0 0.0
        %1189 = vmatpush1.msra.mxu0 %v1008
        %1190 = vmatprep.subr.mxu0 0.0
        %1191 = vmatpush1.msra.mxu0 %v1009
        %1192 = vmatprep.subr.mxu0 0.0
        %1193 = vmatpush1.msra.mxu0 %v1010
        %1194 = vmatprep.subr.mxu0 0.0
        %1195 = vmatpush1.msra.mxu0 %v1011
        %1196 = vmatprep.subr.mxu0 0.0
        %1197 = vmatpush1.msra.mxu0 0.0
        %1198 = vmatprep.subr.mxu0 0.0
        %1199 = vmatpush1.msra.mxu0 0.0
        %1200 = vmatprep.subr.mxu0 0.0
        %1201 = vmatpush1.msra.mxu0 0.0
        %1202 = vmatprep.subr.mxu0 0.0
        %1203 = vmatpush1.msra.mxu0 0.0
        %1204 = vmatprep.subr.mxu0 0.0
        %1205 = vmatpush1.msra.mxu0 0.0
        %1206 = vmatprep.subr.mxu0 0.0
        %1207 = vmatpush1.msra.mxu0 0.0
        %1208 = vmatprep.subr.mxu0 0.0
        %1209 = vmatpush1.msra.mxu0 0.0
        %1210 = vmatprep.subr.mxu0 0.0
        %1211 = vmatpush1.msra.mxu0 0.0
        %1212 = vmatprep.subr.mxu0 0.0
        %1213 = vmatpush1.msra.mxu0 0.0
        %1214 = vmatprep.subr.mxu0 0.0
        %1215 = vmatpush1.msra.mxu0 0.0
        %1216 = vmatprep.subr.mxu0 0.0
        %1217 = vmatpush1.msra.mxu0 0.0
        %1218 = vmatprep.subr.mxu0 0.0
        %1219 = vmatpush1.msra.mxu0 0.0
        %1220 = vmatprep.subr.mxu0 0.0
        %1221 = vmatpush1.msra.mxu0 0.0
        %1222 = vmatprep.subr.mxu0 0.0
        %1223 = vmatpush1.msra.mxu0 0.0
        %1224 = vmatprep.subr.mxu0 0.0
        %1225 = vmatpush1.msra.mxu0 0.0
        %1226 = vmatprep.subr.mxu0 0.0
        %1227 = vmatpush1.msra.mxu0 0.0
        %1228 = vmatprep.mubr.f32.mxu0 0.0
        %1229 = vmatmul.mubr.f32.gmra.mrb[0].mxu0 %v1162
        %v1230 = vpop.f32.mrb[0].mxu0
        %v1231 = vadd.f32 0.0, %v1230
        %v1232 = vpop.f32.mrb[0].mxu0
        %1233 = vmatprep.mubr.f32.mxu0 0.0
        %1234 = vmatmul.mubr.f32.gmra.mrb[0].mxu0 %v1163
        %v1235 = vpop.f32.mrb[0].mxu0
        %v1236 = vadd.f32 0.0, %v1235
        %v1237 = vpop.f32.mrb[0].mxu0
        %1238 = vdwg.mxu0
        %1239 = vst.msk [vmem:[#allocation4] sm:$0xff] %vm1012, %v1231
        %1240 = vst.msk [vmem:[#allocation4 + $0x8] sm:$0xff] %vm1012, %v1236
        %v1241 = vld [vmem:[#allocation2] sm:$0xff]
        %v1242 = vld [vmem:[#allocation2 + $0x8] sm:$0xff]
        %v1243 = vld [vmem:[#allocation2 + $0x10] sm:$0xff]
        %v1244 = vld [vmem:[#allocation2 + $0x18] sm:$0xff]
        %v1245 = vld [vmem:[#allocation2 + $0x20] sm:$0xff]
        %v1246 = vld [vmem:[#allocation2 + $0x28] sm:$0xff]
        %v1247 = vld [vmem:[#allocation2 + $0x30] sm:$0xff]
        %v1248 = vld [vmem:[#allocation2 + $0x38] sm:$0xff]
        %v1249 = vld [vmem:[#allocation2 + $0x40] sm:$0xff]
        %v1250 = vld [vmem:[#allocation2 + $0x48] sm:$0xff]
        %v1251 = vld [vmem:[#allocation2 + $0x50] sm:$0xff]
        %v1252 = vld [vmem:[#allocation2 + $0x58] sm:$0xff]
        %v1253 = vld [vmem:[#allocation2 + $0x60] sm:$0xff]
        %v1254 = vld [vmem:[#allocation2 + $0x68] sm:$0xff]
        %v1255 = vld [vmem:[#allocation2 + $0x70] sm:$0xff]
        %v1256 = vld [vmem:[#allocation2 + $0x78] sm:$0xff]
        %v1257 = vld [vmem:[#allocation3] sm:$0xff]
        %v1258 = vld [vmem:[#allocation3 + $0x8] sm:$0xff]
        %v1259 = vld [vmem:[#allocation3 + $0x10] sm:$0xff]
        %v1260 = vld [vmem:[#allocation3 + $0x18] sm:$0xff]
        %v1261 = vld [vmem:[#allocation3 + $0x20] sm:$0xff]
        %v1262 = vld [vmem:[#allocation3 + $0x28] sm:$0xff]
        %v1263 = vld [vmem:[#allocation3 + $0x30] sm:$0xff]
        %v1264 = vld [vmem:[#allocation3 + $0x38] sm:$0xff]
        %v1265 = vld [vmem:[#allocation3 + $0x40] sm:$0xff]
        %v1266 = vld [vmem:[#allocation3 + $0x48] sm:$0xff]
        %v1267 = vld [vmem:[#allocation3 + $0x50] sm:$0xff]
        %v1268 = vld [vmem:[#allocation3 + $0x58] sm:$0xff]
        %v1269 = vld [vmem:[#allocation3 + $0x60] sm:$0xff]
        %v1270 = vld [vmem:[#allocation3 + $0x68] sm:$0xff]
        %v1271 = vld [vmem:[#allocation3 + $0x70] sm:$0xff]
        %v1272 = vld [vmem:[#allocation3 + $0x78] sm:$0xff]
        %1273 = vrot.lane.b32.xlu0 %v965, 120
        %v1274 = vpop.permute.xlu0 %1273
        %1275 = vrot.lane.b32.xlu0 %v970, 120
        %v1276 = vpop.permute.xlu0 %1275
        %1293 = vrot.lane.b32.xlu0 %v1241, 120
        %v1294 = vpop.permute.xlu0 %1293
        %1295 = vrot.lane.b32.xlu0 %v1242, 120
        %v1296 = vpop.permute.xlu0 %1295
        %1297 = vrot.lane.b32.xlu0 %v1243, 120
        %v1298 = vpop.permute.xlu0 %1297
        %1299 = vrot.lane.b32.xlu0 %v1244, 120
        %v1300 = vpop.permute.xlu0 %1299
        %1301 = vrot.lane.b32.xlu0 %v1245, 120
        %v1302 = vpop.permute.xlu0 %1301
        %1303 = vrot.lane.b32.xlu0 %v1246, 120
        %v1304 = vpop.permute.xlu0 %1303
        %1305 = vrot.lane.b32.xlu0 %v1247, 120
        %v1306 = vpop.permute.xlu0 %1305
        %1307 = vrot.lane.b32.xlu0 %v1248, 120
        %v1308 = vpop.permute.xlu0 %1307
        %1309 = vrot.lane.b32.xlu0 %v1249, 120
        %v1310 = vpop.permute.xlu0 %1309
        %1311 = vrot.lane.b32.xlu0 %v1250, 120
        %v1312 = vpop.permute.xlu0 %1311
        %1313 = vrot.lane.b32.xlu0 %v1251, 120
        %v1314 = vpop.permute.xlu0 %1313
        %1315 = vrot.lane.b32.xlu0 %v1252, 120
        %v1316 = vpop.permute.xlu0 %1315
        %1317 = vrot.lane.b32.xlu0 %v1253, 120
        %v1318 = vpop.permute.xlu0 %1317
        %1319 = vrot.lane.b32.xlu0 %v1254, 120
        %v1320 = vpop.permute.xlu0 %1319
        %1321 = vrot.lane.b32.xlu0 %v1255, 120
        %v1322 = vpop.permute.xlu0 %1321
        %1323 = vrot.lane.b32.xlu0 %v1256, 120
        %v1324 = vpop.permute.xlu0 %1323
        %v1325 = vsel %vm1012, %v1274, 0
        %v1327 = vsel %vm1012, %v1276, 0
        %v1329 = vsel %vm1012, %v1294, 0
        %v1331 = vsel %vm1012, %v1296, 0
        %v1333 = vsel %vm1012, %v1298, 0
        %v1335 = vsel %vm1012, %v1300, 0
        %v1337 = vsel %vm1012, %v1302, 0
        %v1339 = vsel %vm1012, %v1304, 0
        %v1341 = vsel %vm1012, %v1306, 0
        %v1343 = vsel %vm1012, %v1308, 0
        %v1345 = vsel %vm1012, %v1310, 0
        %v1347 = vsel %vm1012, %v1312, 0
        %v1349 = vsel %vm1012, %v1314, 0
        %v1351 = vsel %vm1012, %v1316, 0
        %v1353 = vsel %vm1012, %v1318, 0
        %v1355 = vsel %vm1012, %v1320, 0
        %v1357 = vsel %vm1012, %v1322, 0
        %v1359 = vsel %vm1012, %v1324, 0
        %1361 = vmatprep.subr.mxu0 0.0
        %1362 = vmatpush1.xpose.msra.mxu0 %v1329
        %1363 = vmatprep.subr.mxu0 0.0
        %1364 = vmatpush1.xpose.msra.mxu0 %v1331
        %1365 = vmatprep.subr.mxu0 0.0
        %1366 = vmatpush1.xpose.msra.mxu0 %v1333
        %1367 = vmatprep.subr.mxu0 0.0
        %1368 = vmatpush1.xpose.msra.mxu0 %v1335
        %1369 = vmatprep.subr.mxu0 0.0
        %1370 = vmatpush1.xpose.msra.mxu0 %v1337
        %1371 = vmatprep.subr.mxu0 0.0
        %1372 = vmatpush1.xpose.msra.mxu0 %v1339
        %1373 = vmatprep.subr.mxu0 0.0
        %1374 = vmatpush1.xpose.msra.mxu0 %v1341
        %1375 = vmatprep.subr.mxu0 0.0
        %1376 = vmatpush1.xpose.msra.mxu0 %v1343
        %1377 = vmatprep.subr.mxu0 0.0
        %1378 = vmatpush1.xpose.msra.mxu0 %v1345
        %1379 = vmatprep.subr.mxu0 0.0
        %1380 = vmatpush1.xpose.msra.mxu0 %v1347
        %1381 = vmatprep.subr.mxu0 0.0
        %1382 = vmatpush1.xpose.msra.mxu0 %v1349
        %1383 = vmatprep.subr.mxu0 0.0
        %1384 = vmatpush1.xpose.msra.mxu0 %v1351
        %1385 = vmatprep.subr.mxu0 0.0
        %1386 = vmatpush1.xpose.msra.mxu0 %v1353
        %1387 = vmatprep.subr.mxu0 0.0
        %1388 = vmatpush1.xpose.msra.mxu0 %v1355
        %1389 = vmatprep.subr.mxu0 0.0
        %1390 = vmatpush1.xpose.msra.mxu0 %v1357
        %1391 = vmatprep.subr.mxu0 0.0
        %1392 = vmatpush1.xpose.msra.mxu0 %v1359
        %1393 = vmatprep.subr.mxu0 0.0
        %1394 = vmatpush1.xpose.msra.mxu0 0.0
        %1395 = vmatprep.subr.mxu0 0.0
        %1396 = vmatpush1.xpose.msra.mxu0 0.0
        %1397 = vmatprep.subr.mxu0 0.0
        %1398 = vmatpush1.xpose.msra.mxu0 0.0
        %1399 = vmatprep.subr.mxu0 0.0
        %1400 = vmatpush1.xpose.msra.mxu0 0.0
        %1401 = vmatprep.subr.mxu0 0.0
        %1402 = vmatpush1.xpose.msra.mxu0 0.0
        %1403 = vmatprep.subr.mxu0 0.0
        %1404 = vmatpush1.xpose.msra.mxu0 0.0
        %1405 = vmatprep.subr.mxu0 0.0
        %1406 = vmatpush1.xpose.msra.mxu0 0.0
        %1407 = vmatprep.subr.mxu0 0.0
        %1408 = vmatpush1.xpose.msra.mxu0 0.0
        %1409 = vmatprep.subr.mxu0 0.0
        %1410 = vmatpush1.xpose.msra.mxu0 0.0
        %1411 = vmatprep.subr.mxu0 0.0
        %1412 = vmatpush1.xpose.msra.mxu0 0.0
        %1413 = vmatprep.subr.mxu0 0.0
        %1414 = vmatpush1.xpose.msra.mxu0 0.0
        %1415 = vmatprep.subr.mxu0 0.0
        %1416 = vmatpush1.xpose.msra.mxu0 0.0
        %1417 = vmatprep.subr.mxu0 0.0
        %1418 = vmatpush1.xpose.msra.mxu0 0.0
        %1419 = vmatprep.subr.mxu0 0.0
        %1420 = vmatpush1.xpose.msra.mxu0 0.0
        %1421 = vmatprep.subr.mxu0 0.0
        %1422 = vmatpush1.xpose.msra.mxu0 0.0
        %1423 = vmatprep.subr.mxu0 0.0
        %1424 = vmatpush1.xpose.msra.mxu0 0.0
        %1425 = vmatprep.mubr.f32.mxu0 0.0
        %1426 = vmatmul.mubr.f32.gmra.mrb[0].mxu0 %v1325
        %v1427 = vpop.f32.mrb[0].mxu0
        %v1428 = vadd.f32 %v973, %v1427
        %v1429 = vpop.f32.mrb[0].mxu0
        %1430 = vmatprep.mubr.f32.mxu0 0.0
        %1431 = vmatmul.mubr.f32.gmra.mrb[0].mxu0 %v1327
        %v1432 = vpop.f32.mrb[0].mxu0
        %v1433 = vadd.f32 %v974, %v1432
        %v1434 = vpop.f32.mrb[0].mxu0
        %1435 = vdwg.mxu0
        %v1436 = vsel %vm1143, -1e+08, %v1428
        %v1437 = vsel %vm1143, -1e+08, %v1433
        %1438 = vmax.xlane.f32.xlu0 %v1436
        %v1439 = vpop.xlane.xlu0 %1438
        %1440 = vmax.xlane.f32.xlu0 %v1437
        %v1441 = vpop.xlane.xlu0 %1440
        %v1442 = vsub.f32 %v1436, %v1439
        %v1443 = vsub.f32 %v1437, %v1441
        %v1444 = vmul.f32 %v1442, 1.442695
        %v1445 = vpow.pop %v1444
        %v1446 = vmul.f32 %v1443, 1.442695
        %v1447 = vpow.pop %v1446
        %1448 = vadd.xlane.f32.xlu0 %v1445
        %v1449 = vpop.xlane.xlu0 %1448
        %1450 = vadd.xlane.f32.xlu0 %v1447
        %v1451 = vpop.xlane.xlu0 %1450
        %v1452 = vrcp.pop %v1449
        %v1453 = vrcp.pop %v1451
        %v1454 = vmul.f32 %v1445, %v1452
        %v1455 = vmul.f32 %v1447, %v1453
        %1472 = vrot.lane.b32.xlu0 %v1257, 120
        %v1473 = vpop.permute.xlu0 %1472
        %1474 = vrot.lane.b32.xlu0 %v1258, 120
        %v1475 = vpop.permute.xlu0 %1474
        %1476 = vrot.lane.b32.xlu0 %v1259, 120
        %v1477 = vpop.permute.xlu0 %1476
        %1478 = vrot.lane.b32.xlu0 %v1260, 120
        %v1479 = vpop.permute.xlu0 %1478
        %1480 = vrot.lane.b32.xlu0 %v1261, 120
        %v1481 = vpop.permute.xlu0 %1480
        %1482 = vrot.lane.b32.xlu0 %v1262, 120
        %v1483 = vpop.permute.xlu0 %1482
        %1484 = vrot.lane.b32.xlu0 %v1263, 120
        %v1485 = vpop.permute.xlu0 %1484
        %1486 = vrot.lane.b32.xlu0 %v1264, 120
        %v1487 = vpop.permute.xlu0 %1486
        %1488 = vrot.lane.b32.xlu0 %v1265, 120
        %v1489 = vpop.permute.xlu0 %1488
        %1490 = vrot.lane.b32.xlu0 %v1266, 120
        %v1491 = vpop.permute.xlu0 %1490
        %1492 = vrot.lane.b32.xlu0 %v1267, 120
        %v1493 = vpop.permute.xlu0 %1492
        %1494 = vrot.lane.b32.xlu0 %v1268, 120
        %v1495 = vpop.permute.xlu0 %1494
        %1496 = vrot.lane.b32.xlu0 %v1269, 120
        %v1497 = vpop.permute.xlu0 %1496
        %1498 = vrot.lane.b32.xlu0 %v1270, 120
        %v1499 = vpop.permute.xlu0 %1498
        %1500 = vrot.lane.b32.xlu0 %v1271, 120
        %v1501 = vpop.permute.xlu0 %1500
        %1502 = vrot.lane.b32.xlu0 %v1272, 120
        %v1503 = vpop.permute.xlu0 %1502
        %1520 = vmatprep.subr.mxu0 0.0
        %1521 = vmatpush1.msra.mxu0 %v1473
        %1522 = vmatprep.subr.mxu0 0.0
        %1523 = vmatpush1.msra.mxu0 %v1475
        %1524 = vmatprep.subr.mxu0 0.0
        %1525 = vmatpush1.msra.mxu0 %v1477
        %1526 = vmatprep.subr.mxu0 0.0
        %1527 = vmatpush1.msra.mxu0 %v1479
        %1528 = vmatprep.subr.mxu0 0.0
        %1529 = vmatpush1.msra.mxu0 %v1481
        %1530 = vmatprep.subr.mxu0 0.0
        %1531 = vmatpush1.msra.mxu0 %v1483
        %1532 = vmatprep.subr.mxu0 0.0
        %1533 = vmatpush1.msra.mxu0 %v1485
        %1534 = vmatprep.subr.mxu0 0.0
        %1535 = vmatpush1.msra.mxu0 %v1487
        %1536 = vmatprep.subr.mxu0 0.0
        %1537 = vmatpush1.msra.mxu0 %v1489
        %1538 = vmatprep.subr.mxu0 0.0
        %1539 = vmatpush1.msra.mxu0 %v1491
        %1540 = vmatprep.subr.mxu0 0.0
        %1541 = vmatpush1.msra.mxu0 %v1493
        %1542 = vmatprep.subr.mxu0 0.0
        %1543 = vmatpush1.msra.mxu0 %v1495
        %1544 = vmatprep.subr.mxu0 0.0
        %1545 = vmatpush1.msra.mxu0 %v1497
        %1546 = vmatprep.subr.mxu0 0.0
        %1547 = vmatpush1.msra.mxu0 %v1499
        %1548 = vmatprep.subr.mxu0 0.0
        %1549 = vmatpush1.msra.mxu0 %v1501
        %1550 = vmatprep.subr.mxu0 0.0
        %1551 = vmatpush1.msra.mxu0 %v1503
        %1552 = vmatprep.subr.mxu0 0.0
        %1553 = vmatpush1.msra.mxu0 0.0
        %1554 = vmatprep.subr.mxu0 0.0
        %1555 = vmatpush1.msra.mxu0 0.0
        %1556 = vmatprep.subr.mxu0 0.0
        %1557 = vmatpush1.msra.mxu0 0.0
        %1558 = vmatprep.subr.mxu0 0.0
        %1559 = vmatpush1.msra.mxu0 0.0
        %1560 = vmatprep.subr.mxu0 0.0
        %1561 = vmatpush1.msra.mxu0 0.0
        %1562 = vmatprep.subr.mxu0 0.0
        %1563 = vmatpush1.msra.mxu0 0.0
        %1564 = vmatprep.subr.mxu0 0.0
        %1565 = vmatpush1.msra.mxu0 0.0
        %1566 = vmatprep.subr.mxu0 0.0
        %1567 = vmatpush1.msra.mxu0 0.0
        %1568 = vmatprep.subr.mxu0 0.0
        %1569 = vmatpush1.msra.mxu0 0.0
        %1570 = vmatprep.subr.mxu0 0.0
        %1571 = vmatpush1.msra.mxu0 0.0
        %1572 = vmatprep.subr.mxu0 0.0
        %1573 = vmatpush1.msra.mxu0 0.0
        %1574 = vmatprep.subr.mxu0 0.0
        %1575 = vmatpush1.msra.mxu0 0.0
        %1576 = vmatprep.subr.mxu0 0.0
        %1577 = vmatpush1.msra.mxu0 0.0
        %1578 = vmatprep.subr.mxu0 0.0
        %1579 = vmatpush1.msra.mxu0 0.0
        %1580 = vmatprep.subr.mxu0 0.0
        %1581 = vmatpush1.msra.mxu0 0.0
        %1582 = vmatprep.subr.mxu0 0.0
        %1583 = vmatpush1.msra.mxu0 0.0
        %1584 = vmatprep.mubr.f32.mxu0 0.0
        %1585 = vmatmul.mubr.f32.gmra.mrb[0].mxu0 %v1454
        %v1586 = vpop.f32.mrb[0].mxu0
        %v1587 = vadd.f32 0.0, %v1586
        %v1588 = vpop.f32.mrb[0].mxu0
        %1589 = vmatprep.mubr.f32.mxu0 0.0
        %1590 = vmatmul.mubr.f32.gmra.mrb[0].mxu0 %v1455
        %v1591 = vpop.f32.mrb[0].mxu0
        %v1592 = vadd.f32 0.0, %v1591
        %v1593 = vpop.f32.mrb[0].mxu0
        %1594 = vdwg.mxu0
        %1597 = vrot.lane.b32.xlu0 %v1587, 8
        %v1598 = vpop.permute.xlu0 %1597
        %1599 = vrot.lane.b32.xlu0 %v1592, 8
        %v1600 = vpop.permute.xlu0 %1599
        %vm1603 = vcmask 130112
        %1604 = vst.msk [vmem:[#allocation4] sm:$0xff] %vm1603, %v1598
        %1605 = vst.msk [vmem:[#allocation4 + $0x8] sm:$0xff] %vm1603, %v1600
        %v1606 = vld [vmem:[#allocation2] sm:$0xff]
        %v1607 = vld [vmem:[#allocation2 + $0x8] sm:$0xff]
        %v1608 = vld [vmem:[#allocation2 + $0x10] sm:$0xff]
        %v1609 = vld [vmem:[#allocation2 + $0x18] sm:$0xff]
        %v1610 = vld [vmem:[#allocation2 + $0x20] sm:$0xff]
        %v1611 = vld [vmem:[#allocation2 + $0x28] sm:$0xff]
        %v1612 = vld [vmem:[#allocation2 + $0x30] sm:$0xff]
        %v1613 = vld [vmem:[#allocation2 + $0x38] sm:$0xff]
        %v1614 = vld [vmem:[#allocation2 + $0x40] sm:$0xff]
        %v1615 = vld [vmem:[#allocation2 + $0x48] sm:$0xff]
        %v1616 = vld [vmem:[#allocation2 + $0x50] sm:$0xff]
        %v1617 = vld [vmem:[#allocation2 + $0x58] sm:$0xff]
        %v1618 = vld [vmem:[#allocation2 + $0x60] sm:$0xff]
        %v1619 = vld [vmem:[#allocation2 + $0x68] sm:$0xff]
        %v1620 = vld [vmem:[#allocation2 + $0x70] sm:$0xff]
        %v1621 = vld [vmem:[#allocation2 + $0x78] sm:$0xff]
        %v1622 = vld [vmem:[#allocation3] sm:$0xff]
        %v1623 = vld [vmem:[#allocation3 + $0x8] sm:$0xff]
        %v1624 = vld [vmem:[#allocation3 + $0x10] sm:$0xff]
        %v1625 = vld [vmem:[#allocation3 + $0x18] sm:$0xff]
        %v1626 = vld [vmem:[#allocation3 + $0x20] sm:$0xff]
        %v1627 = vld [vmem:[#allocation3 + $0x28] sm:$0xff]
        %v1628 = vld [vmem:[#allocation3 + $0x30] sm:$0xff]
        %v1629 = vld [vmem:[#allocation3 + $0x38] sm:$0xff]
        %v1630 = vld [vmem:[#allocation3 + $0x40] sm:$0xff]
        %v1631 = vld [vmem:[#allocation3 + $0x48] sm:$0xff]
        %v1632 = vld [vmem:[#allocation3 + $0x50] sm:$0xff]
        %v1633 = vld [vmem:[#allocation3 + $0x58] sm:$0xff]
        %v1634 = vld [vmem:[#allocation3 + $0x60] sm:$0xff]
        %v1635 = vld [vmem:[#allocation3 + $0x68] sm:$0xff]
        %v1636 = vld [vmem:[#allocation3 + $0x70] sm:$0xff]
        %v1637 = vld [vmem:[#allocation3 + $0x78] sm:$0xff]
        %1638 = vrot.lane.b32.xlu0 %v965, 112
        %v1639 = vpop.permute.xlu0 %1638
        %1640 = vrot.lane.b32.xlu0 %v970, 112
        %v1641 = vpop.permute.xlu0 %1640
        %1658 = vrot.lane.b32.xlu0 %v1606, 112
        %v1659 = vpop.permute.xlu0 %1658
        %1660 = vrot.lane.b32.xlu0 %v1607, 112
        %v1661 = vpop.permute.xlu0 %1660
        %1662 = vrot.lane.b32.xlu0 %v1608, 112
        %v1663 = vpop.permute.xlu0 %1662
        %1664 = vrot.lane.b32.xlu0 %v1609, 112
        %v1665 = vpop.permute.xlu0 %1664
        %1666 = vrot.lane.b32.xlu0 %v1610, 112
        %v1667 = vpop.permute.xlu0 %1666
        %1668 = vrot.lane.b32.xlu0 %v1611, 112
        %v1669 = vpop.permute.xlu0 %1668
        %1670 = vrot.lane.b32.xlu0 %v1612, 112
        %v1671 = vpop.permute.xlu0 %1670
        %1672 = vrot.lane.b32.xlu0 %v1613, 112
        %v1673 = vpop.permute.xlu0 %1672
        %1674 = vrot.lane.b32.xlu0 %v1614, 112
        %v1675 = vpop.permute.xlu0 %1674
        %1676 = vrot.lane.b32.xlu0 %v1615, 112
        %v1677 = vpop.permute.xlu0 %1676
        %1678 = vrot.lane.b32.xlu0 %v1616, 112
        %v1679 = vpop.permute.xlu0 %1678
        %1680 = vrot.lane.b32.xlu0 %v1617, 112
        %v1681 = vpop.permute.xlu0 %1680
        %1682 = vrot.lane.b32.xlu0 %v1618, 112
        %v1683 = vpop.permute.xlu0 %1682
        %1684 = vrot.lane.b32.xlu0 %v1619, 112
        %v1685 = vpop.permute.xlu0 %1684
        %1686 = vrot.lane.b32.xlu0 %v1620, 112
        %v1687 = vpop.permute.xlu0 %1686
        %1688 = vrot.lane.b32.xlu0 %v1621, 112
        %v1689 = vpop.permute.xlu0 %1688
        %v1690 = vsel %vm1012, %v1639, 0
        %v1692 = vsel %vm1012, %v1641, 0
        %v1694 = vsel %vm1012, %v1659, 0
        %v1696 = vsel %vm1012, %v1661, 0
        %v1698 = vsel %vm1012, %v1663, 0
        %v1700 = vsel %vm1012, %v1665, 0
        %v1702 = vsel %vm1012, %v1667, 0
        %v1704 = vsel %vm1012, %v1669, 0
        %v1706 = vsel %vm1012, %v1671, 0
        %v1708 = vsel %vm1012, %v1673, 0
        %v1710 = vsel %vm1012, %v1675, 0
        %v1712 = vsel %vm1012, %v1677, 0
        %v1714 = vsel %vm1012, %v1679, 0
        %v1716 = vsel %vm1012, %v1681, 0
        %v1718 = vsel %vm1012, %v1683, 0
        %v1720 = vsel %vm1012, %v1685, 0
        %v1722 = vsel %vm1012, %v1687, 0
        %v1724 = vsel %vm1012, %v1689, 0
        %1726 = vmatprep.subr.mxu0 0.0
        %1727 = vmatpush1.xpose.msra.mxu0 %v1694
        %1728 = vmatprep.subr.mxu0 0.0
        %1729 = vmatpush1.xpose.msra.mxu0 %v1696
        %1730 = vmatprep.subr.mxu0 0.0
        %1731 = vmatpush1.xpose.msra.mxu0 %v1698
        %1732 = vmatprep.subr.mxu0 0.0
        %1733 = vmatpush1.xpose.msra.mxu0 %v1700
        %1734 = vmatprep.subr.mxu0 0.0
        %1735 = vmatpush1.xpose.msra.mxu0 %v1702
        %1736 = vmatprep.subr.mxu0 0.0
        %1737 = vmatpush1.xpose.msra.mxu0 %v1704
        %1738 = vmatprep.subr.mxu0 0.0
        %1739 = vmatpush1.xpose.msra.mxu0 %v1706
        %1740 = vmatprep.subr.mxu0 0.0
        %1741 = vmatpush1.xpose.msra.mxu0 %v1708
        %1742 = vmatprep.subr.mxu0 0.0
        %1743 = vmatpush1.xpose.msra.mxu0 %v1710
        %1744 = vmatprep.subr.mxu0 0.0
        %1745 = vmatpush1.xpose.msra.mxu0 %v1712
        %1746 = vmatprep.subr.mxu0 0.0
        %1747 = vmatpush1.xpose.msra.mxu0 %v1714
        %1748 = vmatprep.subr.mxu0 0.0
        %1749 = vmatpush1.xpose.msra.mxu0 %v1716
        %1750 = vmatprep.subr.mxu0 0.0
        %1751 = vmatpush1.xpose.msra.mxu0 %v1718
        %1752 = vmatprep.subr.mxu0 0.0
        %1753 = vmatpush1.xpose.msra.mxu0 %v1720
        %1754 = vmatprep.subr.mxu0 0.0
        %1755 = vmatpush1.xpose.msra.mxu0 %v1722
        %1756 = vmatprep.subr.mxu0 0.0
        %1757 = vmatpush1.xpose.msra.mxu0 %v1724
        %1758 = vmatprep.subr.mxu0 0.0
        %1759 = vmatpush1.xpose.msra.mxu0 0.0
        %1760 = vmatprep.subr.mxu0 0.0
        %1761 = vmatpush1.xpose.msra.mxu0 0.0
        %1762 = vmatprep.subr.mxu0 0.0
        %1763 = vmatpush1.xpose.msra.mxu0 0.0
        %1764 = vmatprep.subr.mxu0 0.0
        %1765 = vmatpush1.xpose.msra.mxu0 0.0
        %1766 = vmatprep.subr.mxu0 0.0
        %1767 = vmatpush1.xpose.msra.mxu0 0.0
        %1768 = vmatprep.subr.mxu0 0.0
        %1769 = vmatpush1.xpose.msra.mxu0 0.0
        %1770 = vmatprep.subr.mxu0 0.0
        %1771 = vmatpush1.xpose.msra.mxu0 0.0
        %1772 = vmatprep.subr.mxu0 0.0
        %1773 = vmatpush1.xpose.msra.mxu0 0.0
        %1774 = vmatprep.subr.mxu0 0.0
        %1775 = vmatpush1.xpose.msra.mxu0 0.0
        %1776 = vmatprep.subr.mxu0 0.0
        %1777 = vmatpush1.xpose.msra.mxu0 0.0
        %1778 = vmatprep.subr.mxu0 0.0
        %1779 = vmatpush1.xpose.msra.mxu0 0.0
        %1780 = vmatprep.subr.mxu0 0.0
        %1781 = vmatpush1.xpose.msra.mxu0 0.0
        %1782 = vmatprep.subr.mxu0 0.0
        %1783 = vmatpush1.xpose.msra.mxu0 0.0
        %1784 = vmatprep.subr.mxu0 0.0
        %1785 = vmatpush1.xpose.msra.mxu0 0.0
        %1786 = vmatprep.subr.mxu0 0.0
        %1787 = vmatpush1.xpose.msra.mxu0 0.0
        %1788 = vmatprep.subr.mxu0 0.0
        %1789 = vmatpush1.xpose.msra.mxu0 0.0
        %1790 = vmatprep.mubr.f32.mxu0 0.0
        %1791 = vmatmul.mubr.f32.gmra.mrb[0].mxu0 %v1690
        %v1792 = vpop.f32.mrb[0].mxu0
        %v1793 = vadd.f32 %v973, %v1792
        %v1794 = vpop.f32.mrb[0].mxu0
        %1795 = vmatprep.mubr.f32.mxu0 0.0
        %1796 = vmatmul.mubr.f32.gmra.mrb[0].mxu0 %v1692
        %v1797 = vpop.f32.mrb[0].mxu0
        %v1798 = vadd.f32 %v974, %v1797
        %v1799 = vpop.f32.mrb[0].mxu0
        %1800 = vdwg.mxu0
        %v1801 = vsel %vm1143, -1e+08, %v1793
        %v1802 = vsel %vm1143, -1e+08, %v1798
        %1803 = vmax.xlane.f32.xlu0 %v1801
        %v1804 = vpop.xlane.xlu0 %1803
        %1805 = vmax.xlane.f32.xlu0 %v1802
        %v1806 = vpop.xlane.xlu0 %1805
        %v1807 = vsub.f32 %v1801, %v1804
        %v1808 = vsub.f32 %v1802, %v1806
        %v1809 = vmul.f32 %v1807, 1.442695
        %v1810 = vpow.pop %v1809
        %v1811 = vmul.f32 %v1808, 1.442695
        %v1812 = vpow.pop %v1811
        %1813 = vadd.xlane.f32.xlu0 %v1810
        %v1814 = vpop.xlane.xlu0 %1813
        %1815 = vadd.xlane.f32.xlu0 %v1812
        %v1816 = vpop.xlane.xlu0 %1815
        %v1817 = vrcp.pop %v1814
        %v1818 = vrcp.pop %v1816
        %v1819 = vmul.f32 %v1810, %v1817
        %v1820 = vmul.f32 %v1812, %v1818
        %1837 = vrot.lane.b32.xlu0 %v1622, 112
        %v1838 = vpop.permute.xlu0 %1837
        %1839 = vrot.lane.b32.xlu0 %v1623, 112
        %v1840 = vpop.permute.xlu0 %1839
        %1841 = vrot.lane.b32.xlu0 %v1624, 112
        %v1842 = vpop.permute.xlu0 %1841
        %1843 = vrot.lane.b32.xlu0 %v1625, 112
        %v1844 = vpop.permute.xlu0 %1843
        %1845 = vrot.lane.b32.xlu0 %v1626, 112
        %v1846 = vpop.permute.xlu0 %1845
        %1847 = vrot.lane.b32.xlu0 %v1627, 112
        %v1848 = vpop.permute.xlu0 %1847
        %1849 = vrot.lane.b32.xlu0 %v1628, 112
        %v1850 = vpop.permute.xlu0 %1849
        %1851 = vrot.lane.b32.xlu0 %v1629, 112
        %v1852 = vpop.permute.xlu0 %1851
        %1853 = vrot.lane.b32.xlu0 %v1630, 112
        %v1854 = vpop.permute.xlu0 %1853
        %1855 = vrot.lane.b32.xlu0 %v1631, 112
        %v1856 = vpop.permute.xlu0 %1855
        %1857 = vrot.lane.b32.xlu0 %v1632, 112
        %v1858 = vpop.permute.xlu0 %1857
        %1859 = vrot.lane.b32.xlu0 %v1633, 112
        %v1860 = vpop.permute.xlu0 %1859
        %1861 = vrot.lane.b32.xlu0 %v1634, 112
        %v1862 = vpop.permute.xlu0 %1861
        %1863 = vrot.lane.b32.xlu0 %v1635, 112
        %v1864 = vpop.permute.xlu0 %1863
        %1865 = vrot.lane.b32.xlu0 %v1636, 112
        %v1866 = vpop.permute.xlu0 %1865
        %1867 = vrot.lane.b32.xlu0 %v1637, 112
        %v1868 = vpop.permute.xlu0 %1867
        %1885 = vmatprep.subr.mxu0 0.0
        %1886 = vmatpush1.msra.mxu0 %v1838
        %1887 = vmatprep.subr.mxu0 0.0
        %1888 = vmatpush1.msra.mxu0 %v1840
        %1889 = vmatprep.subr.mxu0 0.0
        %1890 = vmatpush1.msra.mxu0 %v1842
        %1891 = vmatprep.subr.mxu0 0.0
        %1892 = vmatpush1.msra.mxu0 %v1844
        %1893 = vmatprep.subr.mxu0 0.0
        %1894 = vmatpush1.msra.mxu0 %v1846
        %1895 = vmatprep.subr.mxu0 0.0
        %1896 = vmatpush1.msra.mxu0 %v1848
        %1897 = vmatprep.subr.mxu0 0.0
        %1898 = vmatpush1.msra.mxu0 %v1850
        %1899 = vmatprep.subr.mxu0 0.0
        %1900 = vmatpush1.msra.mxu0 %v1852
        %1901 = vmatprep.subr.mxu0 0.0
        %1902 = vmatpush1.msra.mxu0 %v1854
        %1903 = vmatprep.subr.mxu0 0.0
        %1904 = vmatpush1.msra.mxu0 %v1856
        %1905 = vmatprep.subr.mxu0 0.0
        %1906 = vmatpush1.msra.mxu0 %v1858
        %1907 = vmatprep.subr.mxu0 0.0
        %1908 = vmatpush1.msra.mxu0 %v1860
        %1909 = vmatprep.subr.mxu0 0.0
        %1910 = vmatpush1.msra.mxu0 %v1862
        %1911 = vmatprep.subr.mxu0 0.0
        %1912 = vmatpush1.msra.mxu0 %v1864
        %1913 = vmatprep.subr.mxu0 0.0
        %1914 = vmatpush1.msra.mxu0 %v1866
        %1915 = vmatprep.subr.mxu0 0.0
        %1916 = vmatpush1.msra.mxu0 %v1868
        %1917 = vmatprep.subr.mxu0 0.0
        %1918 = vmatpush1.msra.mxu0 0.0
        %1919 = vmatprep.subr.mxu0 0.0
        %1920 = vmatpush1.msra.mxu0 0.0
        %1921 = vmatprep.subr.mxu0 0.0
        %1922 = vmatpush1.msra.mxu0 0.0
        %1923 = vmatprep.subr.mxu0 0.0
        %1924 = vmatpush1.msra.mxu0 0.0
        %1925 = vmatprep.subr.mxu0 0.0
        %1926 = vmatpush1.msra.mxu0 0.0
        %1927 = vmatprep.subr.mxu0 0.0
        %1928 = vmatpush1.msra.mxu0 0.0
        %1929 = vmatprep.subr.mxu0 0.0
        %1930 = vmatpush1.msra.mxu0 0.0
        %1931 = vmatprep.subr.mxu0 0.0
        %1932 = vmatpush1.msra.mxu0 0.0
        %1933 = vmatprep.subr.mxu0 0.0
        %1934 = vmatpush1.msra.mxu0 0.0
        %1935 = vmatprep.subr.mxu0 0.0
        %1936 = vmatpush1.msra.mxu0 0.0
        %1937 = vmatprep.subr.mxu0 0.0
        %1938 = vmatpush1.msra.mxu0 0.0
        %1939 = vmatprep.subr.mxu0 0.0
        %1940 = vmatpush1.msra.mxu0 0.0
        %1941 = vmatprep.subr.mxu0 0.0
        %1942 = vmatpush1.msra.mxu0 0.0
        %1943 = vmatprep.subr.mxu0 0.0
        %1944 = vmatpush1.msra.mxu0 0.0
        %1945 = vmatprep.subr.mxu0 0.0
        %1946 = vmatpush1.msra.mxu0 0.0
        %1947 = vmatprep.subr.mxu0 0.0
        %1948 = vmatpush1.msra.mxu0 0.0
        %1949 = vmatprep.mubr.f32.mxu0 0.0
        %1950 = vmatmul.mubr.f32.gmra.mrb[0].mxu0 %v1819
        %v1951 = vpop.f32.mrb[0].mxu0
        %v1952 = vadd.f32 0.0, %v1951
        %v1953 = vpop.f32.mrb[0].mxu0
        %1954 = vmatprep.mubr.f32.mxu0 0.0
        %1955 = vmatmul.mubr.f32.gmra.mrb[0].mxu0 %v1820
        %v1956 = vpop.f32.mrb[0].mxu0
        %v1957 = vadd.f32 0.0, %v1956
        %v1958 = vpop.f32.mrb[0].mxu0
        %1959 = vdwg.mxu0
        %1962 = vrot.lane.b32.xlu0 %v1952, 16
        %v1963 = vpop.permute.xlu0 %1962
        %1964 = vrot.lane.b32.xlu0 %v1957, 16
        %v1965 = vpop.permute.xlu0 %1964
        %vm1968 = vcmask 195712
        %1969 = vst.msk [vmem:[#allocation4] sm:$0xff] %vm1968, %v1963
        %1970 = vst.msk [vmem:[#allocation4 + $0x8] sm:$0xff] %vm1968, %v1965
        %v1971 = vld [vmem:[#allocation2] sm:$0xff]
        %v1972 = vld [vmem:[#allocation2 + $0x8] sm:$0xff]
        %v1973 = vld [vmem:[#allocation2 + $0x10] sm:$0xff]
        %v1974 = vld [vmem:[#allocation2 + $0x18] sm:$0xff]
        %v1975 = vld [vmem:[#allocation2 + $0x20] sm:$0xff]
        %v1976 = vld [vmem:[#allocation2 + $0x28] sm:$0xff]
        %v1977 = vld [vmem:[#allocation2 + $0x30] sm:$0xff]
        %v1978 = vld [vmem:[#allocation2 + $0x38] sm:$0xff]
        %v1979 = vld [vmem:[#allocation2 + $0x40] sm:$0xff]
        %v1980 = vld [vmem:[#allocation2 + $0x48] sm:$0xff]
        %v1981 = vld [vmem:[#allocation2 + $0x50] sm:$0xff]
        %v1982 = vld [vmem:[#allocation2 + $0x58] sm:$0xff]
        %v1983 = vld [vmem:[#allocation2 + $0x60] sm:$0xff]
        %v1984 = vld [vmem:[#allocation2 + $0x68] sm:$0xff]
        %v1985 = vld [vmem:[#allocation2 + $0x70] sm:$0xff]
        %v1986 = vld [vmem:[#allocation2 + $0x78] sm:$0xff]
        %v1987 = vld [vmem:[#allocation3] sm:$0xff]
        %v1988 = vld [vmem:[#allocation3 + $0x8] sm:$0xff]
        %v1989 = vld [vmem:[#allocation3 + $0x10] sm:$0xff]
        %v1990 = vld [vmem:[#allocation3 + $0x18] sm:$0xff]
        %v1991 = vld [vmem:[#allocation3 + $0x20] sm:$0xff]
        %v1992 = vld [vmem:[#allocation3 + $0x28] sm:$0xff]
        %v1993 = vld [vmem:[#allocation3 + $0x30] sm:$0xff]
        %v1994 = vld [vmem:[#allocation3 + $0x38] sm:$0xff]
        %v1995 = vld [vmem:[#allocation3 + $0x40] sm:$0xff]
        %v1996 = vld [vmem:[#allocation3 + $0x48] sm:$0xff]
        %v1997 = vld [vmem:[#allocation3 + $0x50] sm:$0xff]
        %v1998 = vld [vmem:[#allocation3 + $0x58] sm:$0xff]
        %v1999 = vld [vmem:[#allocation3 + $0x60] sm:$0xff]
        %v2000 = vld [vmem:[#allocation3 + $0x68] sm:$0xff]
        %v2001 = vld [vmem:[#allocation3 + $0x70] sm:$0xff]
        %v2002 = vld [vmem:[#allocation3 + $0x78] sm:$0xff]
        %2003 = vrot.lane.b32.xlu0 %v965, 104
        %v2004 = vpop.permute.xlu0 %2003
        %2005 = vrot.lane.b32.xlu0 %v970, 104
        %v2006 = vpop.permute.xlu0 %2005
        %2023 = vrot.lane.b32.xlu0 %v1971, 104
        %v2024 = vpop.permute.xlu0 %2023
        %2025 = vrot.lane.b32.xlu0 %v1972, 104
        %v2026 = vpop.permute.xlu0 %2025
        %2027 = vrot.lane.b32.xlu0 %v1973, 104
        %v2028 = vpop.permute.xlu0 %2027
        %2029 = vrot.lane.b32.xlu0 %v1974, 104
        %v2030 = vpop.permute.xlu0 %2029
        %2031 = vrot.lane.b32.xlu0 %v1975, 104
        %v2032 = vpop.permute.xlu0 %2031
        %2033 = vrot.lane.b32.xlu0 %v1976, 104
        %v2034 = vpop.permute.xlu0 %2033
        %2035 = vrot.lane.b32.xlu0 %v1977, 104
        %v2036 = vpop.permute.xlu0 %2035
        %2037 = vrot.lane.b32.xlu0 %v1978, 104
        %v2038 = vpop.permute.xlu0 %2037
        %2039 = vrot.lane.b32.xlu0 %v1979, 104
        %v2040 = vpop.permute.xlu0 %2039
        %2041 = vrot.lane.b32.xlu0 %v1980, 104
        %v2042 = vpop.permute.xlu0 %2041
        %2043 = vrot.lane.b32.xlu0 %v1981, 104
        %v2044 = vpop.permute.xlu0 %2043
        %2045 = vrot.lane.b32.xlu0 %v1982, 104
        %v2046 = vpop.permute.xlu0 %2045
        %2047 = vrot.lane.b32.xlu0 %v1983, 104
        %v2048 = vpop.permute.xlu0 %2047
        %2049 = vrot.lane.b32.xlu0 %v1984, 104
        %v2050 = vpop.permute.xlu0 %2049
        %2051 = vrot.lane.b32.xlu0 %v1985, 104
        %v2052 = vpop.permute.xlu0 %2051
        %2053 = vrot.lane.b32.xlu0 %v1986, 104
        %v2054 = vpop.permute.xlu0 %2053
        %v2055 = vsel %vm1012, %v2004, 0
        %v2057 = vsel %vm1012, %v2006, 0
        %v2059 = vsel %vm1012, %v2024, 0
        %v2061 = vsel %vm1012, %v2026, 0
        %v2063 = vsel %vm1012, %v2028, 0
        %v2065 = vsel %vm1012, %v2030, 0
        %v2067 = vsel %vm1012, %v2032, 0
        %v2069 = vsel %vm1012, %v2034, 0
        %v2071 = vsel %vm1012, %v2036, 0
        %v2073 = vsel %vm1012, %v2038, 0
        %v2075 = vsel %vm1012, %v2040, 0
        %v2077 = vsel %vm1012, %v2042, 0
        %v2079 = vsel %vm1012, %v2044, 0
        %v2081 = vsel %vm1012, %v2046, 0
        %v2083 = vsel %vm1012, %v2048, 0
        %v2085 = vsel %vm1012, %v2050, 0
        %v2087 = vsel %vm1012, %v2052, 0
        %v2089 = vsel %vm1012, %v2054, 0
        %2091 = vmatprep.subr.mxu0 0.0
        %2092 = vmatpush1.xpose.msra.mxu0 %v2059
        %2093 = vmatprep.subr.mxu0 0.0
        %2094 = vmatpush1.xpose.msra.mxu0 %v2061
        %2095 = vmatprep.subr.mxu0 0.0
        %2096 = vmatpush1.xpose.msra.mxu0 %v2063
        %2097 = vmatprep.subr.mxu0 0.0
        %2098 = vmatpush1.xpose.msra.mxu0 %v2065
        %2099 = vmatprep.subr.mxu0 0.0
        %2100 = vmatpush1.xpose.msra.mxu0 %v2067
        %2101 = vmatprep.subr.mxu0 0.0
        %2102 = vmatpush1.xpose.msra.mxu0 %v2069
        %2103 = vmatprep.subr.mxu0 0.0
        %2104 = vmatpush1.xpose.msra.mxu0 %v2071
        %2105 = vmatprep.subr.mxu0 0.0
        %2106 = vmatpush1.xpose.msra.mxu0 %v2073
        %2107 = vmatprep.subr.mxu0 0.0
        %2108 = vmatpush1.xpose.msra.mxu0 %v2075
        %2109 = vmatprep.subr.mxu0 0.0
        %2110 = vmatpush1.xpose.msra.mxu0 %v2077
        %2111 = vmatprep.subr.mxu0 0.0
        %2112 = vmatpush1.xpose.msra.mxu0 %v2079
        %2113 = vmatprep.subr.mxu0 0.0
        %2114 = vmatpush1.xpose.msra.mxu0 %v2081
        %2115 = vmatprep.subr.mxu0 0.0
        %2116 = vmatpush1.xpose.msra.mxu0 %v2083
        %2117 = vmatprep.subr.mxu0 0.0
        %2118 = vmatpush1.xpose.msra.mxu0 %v2085
        %2119 = vmatprep.subr.mxu0 0.0
        %2120 = vmatpush1.xpose.msra.mxu0 %v2087
        %2121 = vmatprep.subr.mxu0 0.0
        %2122 = vmatpush1.xpose.msra.mxu0 %v2089
        %2123 = vmatprep.subr.mxu0 0.0
        %2124 = vmatpush1.xpose.msra.mxu0 0.0
        %2125 = vmatprep.subr.mxu0 0.0
        %2126 = vmatpush1.xpose.msra.mxu0 0.0
        %2127 = vmatprep.subr.mxu0 0.0
        %2128 = vmatpush1.xpose.msra.mxu0 0.0
        %2129 = vmatprep.subr.mxu0 0.0
        %2130 = vmatpush1.xpose.msra.mxu0 0.0
        %2131 = vmatprep.subr.mxu0 0.0
        %2132 = vmatpush1.xpose.msra.mxu0 0.0
        %2133 = vmatprep.subr.mxu0 0.0
        %2134 = vmatpush1.xpose.msra.mxu0 0.0
        %2135 = vmatprep.subr.mxu0 0.0
        %2136 = vmatpush1.xpose.msra.mxu0 0.0
        %2137 = vmatprep.subr.mxu0 0.0
        %2138 = vmatpush1.xpose.msra.mxu0 0.0
        %2139 = vmatprep.subr.mxu0 0.0
        %2140 = vmatpush1.xpose.msra.mxu0 0.0
        %2141 = vmatprep.subr.mxu0 0.0
        %2142 = vmatpush1.xpose.msra.mxu0 0.0
        %2143 = vmatprep.subr.mxu0 0.0
        %2144 = vmatpush1.xpose.msra.mxu0 0.0
        %2145 = vmatprep.subr.mxu0 0.0
        %2146 = vmatpush1.xpose.msra.mxu0 0.0
        %2147 = vmatprep.subr.mxu0 0.0
        %2148 = vmatpush1.xpose.msra.mxu0 0.0
        %2149 = vmatprep.subr.mxu0 0.0
        %2150 = vmatpush1.xpose.msra.mxu0 0.0
        %2151 = vmatprep.subr.mxu0 0.0
        %2152 = vmatpush1.xpose.msra.mxu0 0.0
        %2153 = vmatprep.subr.mxu0 0.0
        %2154 = vmatpush1.xpose.msra.mxu0 0.0
        %2155 = vmatprep.mubr.f32.mxu0 0.0
        %2156 = vmatmul.mubr.f32.gmra.mrb[0].mxu0 %v2055
        %v2157 = vpop.f32.mrb[0].mxu0
        %v2158 = vadd.f32 %v973, %v2157
        %v2159 = vpop.f32.mrb[0].mxu0
        %2160 = vmatprep.mubr.f32.mxu0 0.0
        %2161 = vmatmul.mubr.f32.gmra.mrb[0].mxu0 %v2057
        %v2162 = vpop.f32.mrb[0].mxu0
        %v2163 = vadd.f32 %v974, %v2162
        %v2164 = vpop.f32.mrb[0].mxu0
        %2165 = vdwg.mxu0
        %v2166 = vsel %vm1143, -1e+08, %v2158
        %v2167 = vsel %vm1143, -1e+08, %v2163
        %2168 = vmax.xlane.f32.xlu0 %v2166
        %v2169 = vpop.xlane.xlu0 %2168
        %2170 = vmax.xlane.f32.xlu0 %v2167
        %v2171 = vpop.xlane.xlu0 %2170
        %v2172 = vsub.f32 %v2166, %v2169
        %v2173 = vsub.f32 %v2167, %v2171
        %v2174 = vmul.f32 %v2172, 1.442695
        %v2175 = vpow.pop %v2174
        %v2176 = vmul.f32 %v2173, 1.442695
        %v2177 = vpow.pop %v2176
        %2178 = vadd.xlane.f32.xlu0 %v2175
        %v2179 = vpop.xlane.xlu0 %2178
        %2180 = vadd.xlane.f32.xlu0 %v2177
        %v2181 = vpop.xlane.xlu0 %2180
        %v2182 = vrcp.pop %v2179
        %v2183 = vrcp.pop %v2181
        %v2184 = vmul.f32 %v2175, %v2182
        %v2185 = vmul.f32 %v2177, %v2183
        %2202 = vrot.lane.b32.xlu0 %v1987, 104
        %v2203 = vpop.permute.xlu0 %2202
        %2204 = vrot.lane.b32.xlu0 %v1988, 104
        %v2205 = vpop.permute.xlu0 %2204
        %2206 = vrot.lane.b32.xlu0 %v1989, 104
        %v2207 = vpop.permute.xlu0 %2206
        %2208 = vrot.lane.b32.xlu0 %v1990, 104
        %v2209 = vpop.permute.xlu0 %2208
        %2210 = vrot.lane.b32.xlu0 %v1991, 104
        %v2211 = vpop.permute.xlu0 %2210
        %2212 = vrot.lane.b32.xlu0 %v1992, 104
        %v2213 = vpop.permute.xlu0 %2212
        %2214 = vrot.lane.b32.xlu0 %v1993, 104
        %v2215 = vpop.permute.xlu0 %2214
        %2216 = vrot.lane.b32.xlu0 %v1994, 104
        %v2217 = vpop.permute.xlu0 %2216
        %2218 = vrot.lane.b32.xlu0 %v1995, 104
        %v2219 = vpop.permute.xlu0 %2218
        %2220 = vrot.lane.b32.xlu0 %v1996, 104
        %v2221 = vpop.permute.xlu0 %2220
        %2222 = vrot.lane.b32.xlu0 %v1997, 104
        %v2223 = vpop.permute.xlu0 %2222
        %2224 = vrot.lane.b32.xlu0 %v1998, 104
        %v2225 = vpop.permute.xlu0 %2224
        %2226 = vrot.lane.b32.xlu0 %v1999, 104
        %v2227 = vpop.permute.xlu0 %2226
        %2228 = vrot.lane.b32.xlu0 %v2000, 104
        %v2229 = vpop.permute.xlu0 %2228
        %2230 = vrot.lane.b32.xlu0 %v2001, 104
        %v2231 = vpop.permute.xlu0 %2230
        %2232 = vrot.lane.b32.xlu0 %v2002, 104
        %v2233 = vpop.permute.xlu0 %2232
        %2250 = vmatprep.subr.mxu0 0.0
        %2251 = vmatpush1.msra.mxu0 %v2203
        %2252 = vmatprep.subr.mxu0 0.0
        %2253 = vmatpush1.msra.mxu0 %v2205
        %2254 = vmatprep.subr.mxu0 0.0
        %2255 = vmatpush1.msra.mxu0 %v2207
        %2256 = vmatprep.subr.mxu0 0.0
        %2257 = vmatpush1.msra.mxu0 %v2209
        %2258 = vmatprep.subr.mxu0 0.0
        %2259 = vmatpush1.msra.mxu0 %v2211
        %2260 = vmatprep.subr.mxu0 0.0
        %2261 = vmatpush1.msra.mxu0 %v2213
        %2262 = vmatprep.subr.mxu0 0.0
        %2263 = vmatpush1.msra.mxu0 %v2215
        %2264 = vmatprep.subr.mxu0 0.0
        %2265 = vmatpush1.msra.mxu0 %v2217
        %2266 = vmatprep.subr.mxu0 0.0
        %2267 = vmatpush1.msra.mxu0 %v2219
        %2268 = vmatprep.subr.mxu0 0.0
        %2269 = vmatpush1.msra.mxu0 %v2221
        %2270 = vmatprep.subr.mxu0 0.0
        %2271 = vmatpush1.msra.mxu0 %v2223
        %2272 = vmatprep.subr.mxu0 0.0
        %2273 = vmatpush1.msra.mxu0 %v2225
        %2274 = vmatprep.subr.mxu0 0.0
        %2275 = vmatpush1.msra.mxu0 %v2227
        %2276 = vmatprep.subr.mxu0 0.0
        %2277 = vmatpush1.msra.mxu0 %v2229
        %2278 = vmatprep.subr.mxu0 0.0
        %2279 = vmatpush1.msra.mxu0 %v2231
        %2280 = vmatprep.subr.mxu0 0.0
        %2281 = vmatpush1.msra.mxu0 %v2233
        %2282 = vmatprep.subr.mxu0 0.0
        %2283 = vmatpush1.msra.mxu0 0.0
        %2284 = vmatprep.subr.mxu0 0.0
        %2285 = vmatpush1.msra.mxu0 0.0
        %2286 = vmatprep.subr.mxu0 0.0
        %2287 = vmatpush1.msra.mxu0 0.0
        %2288 = vmatprep.subr.mxu0 0.0
        %2289 = vmatpush1.msra.mxu0 0.0
        %2290 = vmatprep.subr.mxu0 0.0
        %2291 = vmatpush1.msra.mxu0 0.0
        %2292 = vmatprep.subr.mxu0 0.0
        %2293 = vmatpush1.msra.mxu0 0.0
        %2294 = vmatprep.subr.mxu0 0.0
        %2295 = vmatpush1.msra.mxu0 0.0
        %2296 = vmatprep.subr.mxu0 0.0
        %2297 = vmatpush1.msra.mxu0 0.0
        %2298 = vmatprep.subr.mxu0 0.0
        %2299 = vmatpush1.msra.mxu0 0.0
        %2300 = vmatprep.subr.mxu0 0.0
        %2301 = vmatpush1.msra.mxu0 0.0
        %2302 = vmatprep.subr.mxu0 0.0
        %2303 = vmatpush1.msra.mxu0 0.0
        %2304 = vmatprep.subr.mxu0 0.0
        %2305 = vmatpush1.msra.mxu0 0.0
        %2306 = vmatprep.subr.mxu0 0.0
        %2307 = vmatpush1.msra.mxu0 0.0
        %2308 = vmatprep.subr.mxu0 0.0
        %2309 = vmatpush1.msra.mxu0 0.0
        %2310 = vmatprep.subr.mxu0 0.0
        %2311 = vmatpush1.msra.mxu0 0.0
        %2312 = vmatprep.subr.mxu0 0.0
        %2313 = vmatpush1.msra.mxu0 0.0
        %2314 = vmatprep.mubr.f32.mxu0 0.0
        %2315 = vmatmul.mubr.f32.gmra.mrb[0].mxu0 %v2184
        %v2316 = vpop.f32.mrb[0].mxu0
        %v2317 = vadd.f32 0.0, %v2316
        %v2318 = vpop.f32.mrb[0].mxu0
        %2319 = vmatprep.mubr.f32.mxu0 0.0
        %2320 = vmatmul.mubr.f32.gmra.mrb[0].mxu0 %v2185
        %v2321 = vpop.f32.mrb[0].mxu0
        %v2322 = vadd.f32 0.0, %v2321
        %v2323 = vpop.f32.mrb[0].mxu0
        %2324 = vdwg.mxu0
        %2327 = vrot.lane.b32.xlu0 %v2317, 24
        %v2328 = vpop.permute.xlu0 %2327
        %2329 = vrot.lane.b32.xlu0 %v2322, 24
        %v2330 = vpop.permute.xlu0 %2329
        %vm2333 = vcmask 261312
        %2334 = vst.msk [vmem:[#allocation4] sm:$0xff] %vm2333, %v2328
        %2335 = vst.msk [vmem:[#allocation4 + $0x8] sm:$0xff] %vm2333, %v2330
        %v2336 = vld [vmem:[#allocation4] sm:$0xff]
        %v2337 = vld [vmem:[#allocation4 + $0x8] sm:$0xff]
        %v2338 = vld [vmem:[%s10] sm:$0xff]
        %v2339 = vld [vmem:[%s10 + $0x8] sm:$0xff]
        %v2340 = vld [vmem:[%s10 + $0x10] sm:$0xff]
        %v2341 = vld [vmem:[%s10 + $0x18] sm:$0xff]
        %v2342 = vld [vmem:[%s11] sm:$0x1]
        %v2344 = vlaneseq
        %v2345 = vshrl.u32 %v2344, 7
        %v2346 = vsub.s32 0, %v2345
        %v2347 = vrot.slane %v2342, %v2346
        %v2350 = vsel %vm891, %v2336, 0
        %v2353 = vsel %vm891, %v2337, 0
        %2355 = vmatprep.subr.mxu0 0.0
        %2356 = vmatpush1.msra.mxu0 %v2338
        %2357 = vmatprep.subr.mxu0 0.0
        %2358 = vmatpush1.msra.mxu0 %v2339
        %2359 = vmatprep.subr.mxu0 0.0
        %2360 = vmatpush1.msra.mxu0 %v2340
        %2361 = vmatprep.subr.mxu0 0.0
        %2362 = vmatpush1.msra.mxu0 %v2341
        %2363 = vmatprep.subr.mxu0 0.0
        %2364 = vmatpush1.msra.mxu0 0.0
        %2365 = vmatprep.subr.mxu0 0.0
        %2366 = vmatpush1.msra.mxu0 0.0
        %2367 = vmatprep.subr.mxu0 0.0
        %2368 = vmatpush1.msra.mxu0 0.0
        %2369 = vmatprep.subr.mxu0 0.0
        %2370 = vmatpush1.msra.mxu0 0.0
        %2371 = vmatprep.subr.mxu0 0.0
        %2372 = vmatpush1.msra.mxu0 0.0
        %2373 = vmatprep.subr.mxu0 0.0
        %2374 = vmatpush1.msra.mxu0 0.0
        %2375 = vmatprep.subr.mxu0 0.0
        %2376 = vmatpush1.msra.mxu0 0.0
        %2377 = vmatprep.subr.mxu0 0.0
        %2378 = vmatpush1.msra.mxu0 0.0
        %2379 = vmatprep.subr.mxu0 0.0
        %2380 = vmatpush1.msra.mxu0 0.0
        %2381 = vmatprep.subr.mxu0 0.0
        %2382 = vmatpush1.msra.mxu0 0.0
        %2383 = vmatprep.subr.mxu0 0.0
        %2384 = vmatpush1.msra.mxu0 0.0
        %2385 = vmatprep.subr.mxu0 0.0
        %2386 = vmatpush1.msra.mxu0 0.0
        %2387 = vmatprep.subr.mxu0 0.0
        %2388 = vmatpush1.msra.mxu0 0.0
        %2389 = vmatprep.subr.mxu0 0.0
        %2390 = vmatpush1.msra.mxu0 0.0
        %2391 = vmatprep.subr.mxu0 0.0
        %2392 = vmatpush1.msra.mxu0 0.0
        %2393 = vmatprep.subr.mxu0 0.0
        %2394 = vmatpush1.msra.mxu0 0.0
        %2395 = vmatprep.subr.mxu0 0.0
        %2396 = vmatpush1.msra.mxu0 0.0
        %2397 = vmatprep.subr.mxu0 0.0
        %2398 = vmatpush1.msra.mxu0 0.0
        %2399 = vmatprep.subr.mxu0 0.0
        %2400 = vmatpush1.msra.mxu0 0.0
        %2401 = vmatprep.subr.mxu0 0.0
        %2402 = vmatpush1.msra.mxu0 0.0
        %2403 = vmatprep.subr.mxu0 0.0
        %2404 = vmatpush1.msra.mxu0 0.0
        %2405 = vmatprep.subr.mxu0 0.0
        %2406 = vmatpush1.msra.mxu0 0.0
        %2407 = vmatprep.subr.mxu0 0.0
        %2408 = vmatpush1.msra.mxu0 0.0
        %2409 = vmatprep.subr.mxu0 0.0
        %2410 = vmatpush1.msra.mxu0 0.0
        %2411 = vmatprep.subr.mxu0 0.0
        %2412 = vmatpush1.msra.mxu0 0.0
        %2413 = vmatprep.subr.mxu0 0.0
        %2414 = vmatpush1.msra.mxu0 0.0
        %2415 = vmatprep.subr.mxu0 0.0
        %2416 = vmatpush1.msra.mxu0 0.0
        %2417 = vmatprep.subr.mxu0 0.0
        %2418 = vmatpush1.msra.mxu0 0.0
        %2419 = vmatprep.mubr.f32.mxu0 0.0
        %2420 = vmatmul.mubr.f32.gmra.mrb[0].mxu0 %v2350
        %v2421 = vpop.f32.mrb[0].mxu0
        %v2422 = vadd.f32 %v2347, %v2421
        %v2423 = vpop.f32.mrb[0].mxu0
        %2424 = vmatprep.mubr.f32.mxu0 0.0
        %2425 = vmatmul.mubr.f32.gmra.mrb[0].mxu0 %v2353
        %v2426 = vpop.f32.mrb[0].mxu0
        %v2427 = vadd.f32 %v2347, %v2426
        %v2428 = vpop.f32.mrb[0].mxu0
        %2429 = vdwg.mxu0
        %2430 = vst.msk [vmem:[%s442] sm:$0xff] %vm891, %v2422
        %2431 = vst.msk [vmem:[%s442 + $0x8] sm:$0xff] %vm891, %v2427
        %s2432 = sand.u32 %s302, 1
        %s2433 = scalar_lea.sflag [#allocation8], %s2432
        %s2434 = sand.u32 %s302, 1
        %s2435 = smul.addr %s2434, 16
        %s2436 = scalar_lea.vmem [#allocation7], %s2435
        // Predicated region
        $region69: #{tpu_custom_call.1} parent=63 // pred_check
          %p2437 = pneg %p312
        $region70: #{tpu_custom_call.1} parent=63 // pred_check_branch
          %2439 = sbr.rel (%p2437) target = $region72
        $region71: #{tpu_custom_call.1} parent=63 // pred_region
          %s2440 = smul.u32 2, %s37
          %s2442 = ssub.s32 256, 256
          %2443 = vsyncadd %s2433, %s2442
          %s2444 = smul.addr %s36, 2
          %s2445 = sadd.s32 %s2440, %s2444
          %s2446 = smul.addr %s2445, 128
          %s2447 = scalar_lea.hbm %s12, %s2446
          %s2448 = sshll.u32 %s2436, 4
          %s2449 = int_to_ptr.vmem [resolvable:$true] %s2448
          %2454 = dma.vmem_to_hbm [thread:$0]  %s2449, 256, %s2447, %s2433, 128, 128, 8
        $region72: #{tpu_custom_call.1} parent=63 // pred_fallthru
          _
      $region64: #{tpu_custom_call.1} parent=5 // pred_fallthru
        _
      %p2455 = scmp.le.s32.totalorder 2, %s27
      // Predicated region
      $region73: #{tpu_custom_call.1} parent=5 // pred_check
        %p2456 = pneg %p2455
      $region74: #{tpu_custom_call.1} parent=5 // pred_check_branch
        %2458 = sbr.rel (%p2456) target = $region76
      $region75: #{tpu_custom_call.1} parent=5 // pred_region
        %s2459 = ssub.s32 %s27, 2
        // Predicated region
        $region77: #{tpu_custom_call.1} parent=75 // pred_check
          %p2460 = pneg %p318
        $region78: #{tpu_custom_call.1} parent=75 // pred_check_branch
          %2462 = sbr.rel (%p2460) target = $region80
        $region79: #{tpu_custom_call.1} parent=75 // pred_region
          %s2463 = sand.u32 %s303, 1
          %s2464 = scalar_lea.sflag [#allocation8], %s2463
          %s2465 = sand.u32 %s303, 1
          %s2466 = smul.addr %s2465, 16
          %s2467 = scalar_lea.vmem [#allocation7], %s2466
          %2468 = dma.done %s2464, 256
        $region80: #{tpu_custom_call.1} parent=75 // pred_fallthru
          _
      $region76: #{tpu_custom_call.1} parent=5 // pred_fallthru
        _
    $region6: #{tpu_custom_call.1} parent=1 // loop_footer
      %s31 = sadd.s32 1, %s27
    $region7: #{tpu_custom_call.1} parent=1 // loop_footer_branch
      %26 = sbr.rel target = $region3
    $region8: #{tpu_custom_call.1} parent=1 // loop_exit
      _
    %2469 = vsyncpa [#allocation8], 1
    %s2470 = scalar_lea.sflag [#allocation8], 1
    %2471 = vsyncpa %s2470, 1

</llo_original>
